<compile_context>
chip_gen: v6e
topology: v6e:2x2x1
jax: 0.10.0
libtpu: 0.0.40
codegen_flags: <defaults>
</compile_context>

<pallas_src>
import functools

import jax
import jax.numpy as jnp
from jax.experimental import pallas as pl
from jax.experimental.pallas import tpu as pltpu


def _round_up(x, m):
    return ((x + m - 1) // m) * m


_NEG = -1e30  # finite "minus infinity" for masked softmax lanes


# ----------------------------------------------------------------------------
# Shared tail: global-embedding gate + StackedGRU (runs once per step)
# ----------------------------------------------------------------------------
def _global_emb_and_gru(embs_ref, emb_avg, ge_w1_ref, ge_w2_ref, ge_b_ref,
                        state_ref, layer_refs, newstate_ref, out_ref):
    """emb_avg is (B, Ep) f32; weights stay bf16, activations cast at dots."""
    f32, bf16 = jnp.float32, jnp.bfloat16
    hp = state_ref.shape[2]

    embs_bf = embs_ref[...]                       # (B, Ep) bf16
    embs = embs_bf.astype(f32)

    pre = (jnp.dot(embs_bf, ge_w1_ref[...], preferred_element_type=f32)
           + jnp.dot(emb_avg.astype(bf16), ge_w2_ref[...],
                     preferred_element_type=f32)
           + ge_b_ref[...])                       # ge_b = b1 + b2 (pre-summed)
    hg = jax.nn.sigmoid(pre)
    emb_glb = hg * embs + (1.0 - hg) * emb_avg    # (B, Ep) f32

    # One K=2Ep MXU pass for layer 0 (w_ih is pre-concatenated (2Ep, 3Hp)).
    x = jnp.concatenate([embs, emb_glb], axis=1).astype(bf16)   # (B, 2Ep)

    for l, (w_ih_ref, w_hh_ref, b_ih_ref, b_hh_ref) in enumerate(layer_refs):
        gi = jnp.dot(x, w_ih_ref[...], preferred_element_type=f32) + b_ih_ref[...]
        h_prev = state_ref[l]                     # read BEFORE newstate write
        gh = (jnp.dot(h_prev.astype(bf16), w_hh_ref[...],
                      preferred_element_type=f32) + b_hh_ref[...])
        # gate blocks are lane-aligned: each gate is a full Hp-wide slab
        r = jax.nn.sigmoid(gi[:, 0 * hp:1 * hp] + gh[:, 0 * hp:1 * hp])
        z = jax.nn.sigmoid(gi[:, 1 * hp:2 * hp] + gh[:, 1 * hp:2 * hp])
        n = jnp.tanh(gi[:, 2 * hp:3 * hp] + r * gh[:, 2 * hp:3 * hp])
        h_new = (1.0 - z) * n + z * h_prev        # f32
        newstate_ref[l] = h_new
        x = h_new.astype(bf16)                    # dropout=0.0 -> identity

    out_ref[...] = x                              # (B, Hp) bf16


# ----------------------------------------------------------------------------
# Kernel 1a: first step (output is None -> uniform softmax -> precomputed mean)
# ----------------------------------------------------------------------------
def _first_step_kernel(*refs, num_layers):
    pos = 0

    def nxt():
        nonlocal pos
        r = refs[pos]
        pos += 1
        return r

    embs_ref, embavg0_ref = nxt(), nxt()
    ge_w1_ref, ge_w2_ref, ge_b_ref = nxt(), nxt(), nxt()
    state_ref = nxt()
    layer_refs = [tuple(nxt() for _ in range(4)) for _ in range(num_layers)]
    newstate_ref, out_ref = nxt(), nxt()

    emb_avg = jnp.broadcast_to(embavg0_ref[...], embs_ref.shape)  # (B, Ep) f32
    _global_emb_and_gru(embs_ref, emb_avg, ge_w1_ref, ge_w2_ref, ge_b_ref,
                        state_ref, layer_refs, newstate_ref, out_ref)


# ----------------------------------------------------------------------------
# Kernel 1b: vocab-tiled online softmax + emb_avg reduction + GRU at last tile
# ----------------------------------------------------------------------------
def _decode_step_kernel(*refs, num_layers, vocab, inv_tau):
    pos = 0

    def nxt():
        nonlocal pos
        r = refs[pos]
        pos += 1
        return r

    prev_ref, embw_ref = nxt(), nxt()             # (B, tv) f32, (tv, Ep) bf16
    embs_ref = nxt()
    ge_w1_ref, ge_w2_ref, ge_b_ref = nxt(), nxt(), nxt()
    state_ref = nxt()
    layer_refs = [tuple(nxt() for _ in range(4)) for _ in range(num_layers)]
    newstate_ref, out_ref = nxt(), nxt()
    m_scr, l_scr, acc_scr = nxt(), nxt(), nxt()   # (B,1),(B,1),(B,Ep) f32

    f32, bf16 = jnp.float32, jnp.bfloat16
    k = pl.program_id(0)
    v_tile = prev_ref.shape[1]

    @pl.when(k == 0)
    def _():
        m_scr[...] = jnp.full_like(m_scr, _NEG)
        l_scr[...] = jnp.zeros_like(l_scr)
        acc_scr[...] = jnp.zeros_like(acc_scr)

    # ---- online softmax over this vocab tile (masked to the real vocab) ----
    logits = prev_ref[...] * inv_tau                                  # (B, tv)
    col = jax.lax.broadcasted_iota(jnp.int32, logits.shape, 1) + k * v_tile
    valid = col < vocab
    logits = jnp.where(valid, logits, jnp.float32(_NEG))

    m_prev = m_scr[...]                                               # (B, 1)
    m_new = jnp.maximum(m_prev, jnp.max(logits, axis=1, keepdims=True))
    alpha = jnp.exp(m_prev - m_new)
    p = jnp.where(valid, jnp.exp(logits - m_new), 0.0)                # (B, tv)
    l_scr[...] = alpha * l_scr[...] + jnp.sum(p, axis=1, keepdims=True)
    acc_scr[...] = alpha * acc_scr[...] + jnp.dot(
        p.astype(bf16), embw_ref[...], preferred_element_type=f32)
    m_scr[...] = m_new

    # ---- finalize: exact normalization, then gating + GRU ------------------
    @pl.when(k == pl.num_programs(0) - 1)
    def _():
        emb_avg = acc_scr[...] / l_scr[...]       # exact (no approx reciprocal)
        _global_emb_and_gru(embs_ref, emb_avg, ge_w1_ref, ge_w2_ref, ge_b_ref,
                            state_ref, layer_refs, newstate_ref, out_ref)


# ----------------------------------------------------------------------------
# Kernel 2: compute_score, vocab-tiled along the output (N) axis, "parallel"
# ----------------------------------------------------------------------------
def _score_kernel(rnn_out_ref, linw_ref, linb_ref, scores_ref):
    scores_ref[...] = (jnp.dot(rnn_out_ref[...], linw_ref[...],
                               preferred_element_type=jnp.float32)
                       + linb_ref[...])


# ----------------------------------------------------------------------------
# Parameter preparation (one-time, amortized over decode steps)
# ----------------------------------------------------------------------------
def prepare_params(params, v_tile=1024):
    """Pad / transpose / regroup PyTorch-layout params for the kernels.

    - weights pre-transposed to [in, out] and kept in their bf16 storage dtype
    - GRU gates (r,z,n) each padded to Hp -> lane-aligned 128-wide gate slabs
    - layer-0 w_ih pre-concatenated to (2Ep, 3Hp) (single K=2Ep MXU pass)
    - ge biases pre-summed; feature dims zero-padded to 128-lane multiples
    - vocab padded to a multiple of the chosen vocab tile
    """
    f32 = jnp.float32
    emb_w = params["emb_weight"]                  # (V, E) bf16
    V, E = emb_w.shape
    H = params["gru_layers"][0]["w_hh"].shape[1]
    Ep, Hp = _round_up(E, 128), _round_up(H, 128)
    v_tile = _round_up(min(v_tile, _round_up(V, 128)), 128)
    Vp = _round_up(V, v_tile)

    def pad2(x, rows, cols):
        return jnp.pad(x, ((0, rows - x.shape[0]), (0, cols - x.shape[1])))

    def gate_blocks(w, in_p):
        # w: (3H, in_dim) torch layout, gates (r,z,n) -> (in_p, 3*Hp), bf16
        cols = [pad2(w[g * H:(g + 1) * H, :].T, in_p, Hp) for g in range(3)]
        return jnp.concatenate(cols, axis=1)

    def gate_bias(b):
        b = b.reshape(-1).astype(f32)
        cols = [jnp.pad(b[g * H:(g + 1) * H], (0, Hp - H)) for g in range(3)]
        return jnp.concatenate(cols).reshape(1, 3 * Hp)

    layers = []
    for l, lp in enumerate(params["gru_layers"]):
        if l == 0:
            # cat([embs, emb_glb]) @ W_ih.T as one (2Ep, 3Hp) matrix
            w_ih = jnp.concatenate([gate_blocks(lp["w_ih"][:, :E], Ep),
                                    gate_blocks(lp["w_ih"][:, E:], Ep)], axis=0)
        else:
            w_ih = gate_blocks(lp["w_ih"], Hp)
        layers.append({
            "w_ih": w_ih,
            "w_hh": gate_blocks(lp["w_hh"], Hp),
            "b_ih": gate_bias(lp["b_ih"]),
            "b_hh": gate_bias(lp["b_hh"]),
        })

    return {
        "E": E, "H": H, "V": V, "Ep": Ep, "Hp": Hp, "Vp": Vp, "v_tile": v_tile,
        # gather table padded to Ep once -> jnp.take yields (B, Ep) directly
        "emb_w_gather": pad2(emb_w, V, Ep),
        # vocab-tiled copy for the probs @ W reduction
        # TODO(synk): int8 (v5e/v6e) / fp8 (v7x) storage + dequant scale here.
        "emb_w_p": pad2(emb_w, Vp, Ep),
        # output=None => softmax(zeros) uniform => emb_avg == column mean
        "emb_avg0_p": pad2(emb_w.astype(f32).mean(axis=0, keepdims=True), 1, Ep),
        "ge_w1_t": pad2(params["ge_w1"].T, Ep, Ep),
        "ge_w2_t": pad2(params["ge_w2"].T, Ep, Ep),
        "ge_b": pad2((params["ge_b1"] + params["ge_b2"]).reshape(1, -1)
                     .astype(f32), 1, Ep),
        "lin_w_t": pad2(params["lin_w"].T, Hp, Vp),
        "lin_b": pad2(params["lin_b"].reshape(1, -1).astype(f32), 1, Vp),
        "layers": layers,
    }


# ----------------------------------------------------------------------------
# rnn_decoder forward (one step); state/scores stay padded across steps
# ----------------------------------------------------------------------------
def _vmem():
    return pl.BlockSpec(memory_space=pltpu.MemorySpace.VMEM)


def _resident_spec(shape):
    nz = (0,) * len(shape)
    return pl.BlockSpec(shape, lambda *_: nz)


def rnn_decoder_forward(token_ids, state_p, prep, prev_scores_p=None, tau=1.0):
    """One decode step.

    token_ids:     (B,) int32
    state_p:       (L, B, Hp) f32, padded hidden state (updated in place)
    prev_scores_p: (B, Vp) f32 padded scores from the previous step, or None
    Returns (scores_p (B, Vp) f32, new_state_p (L, B, Hp) f32, attn=None).
    Padded columns are zero; feed the padded outputs directly to the next step.
    """
    f32, bf16 = jnp.float32, jnp.bfloat16
    Ep, Hp, Vp, V = prep["Ep"], prep["Hp"], prep["Vp"], prep["V"]
    v_tile = prep["v_tile"]
    L = len(prep["layers"])
    B = token_ids.shape[0]
    nv = Vp // v_tile

    # TODO(synk): fold this gather into kernel 1 (scalar-prefetch + row DMA).
    embs_p = jnp.take(prep["emb_w_gather"], token_ids, axis=0)      # (B, Ep) bf16

    layer_inputs = []
    for lp in prep["layers"]:
        layer_inputs += [lp["w_ih"], lp["w_hh"], lp["b_ih"], lp["b_hh"]]

    out_shapes = (jax.ShapeDtypeStruct((L, B, Hp), f32),
                  jax.ShapeDtypeStruct((B, Hp), bf16))

    if prev_scores_p is None:
        # first step: softmax(zeros) is uniform -> no vocab reduction at all
        inputs = ([embs_p, prep["emb_avg0_p"], prep["ge_w1_t"], prep["ge_w2_t"],
                   prep["ge_b"], state_p] + layer_inputs)
        state_idx = 5
        new_state_p, rnn_out = pl.pallas_call(
            functools.partial(_first_step_kernel, num_layers=L),
            in_specs=[_vmem() for _ in inputs],
            out_specs=(_vmem(), _vmem()),
            out_shape=out_shapes,
            input_output_aliases={state_idx: 0},   # in-place state update
        )(*inputs)
    else:
        assert prev_scores_p.shape == (B, Vp)
        inputs = ([prev_scores_p, prep["emb_w_p"], embs_p, prep["ge_w1_t"],
                   prep["ge_w2_t"], prep["ge_b"], state_p] + layer_inputs)
        state_idx = 6
        in_specs = [
            pl.BlockSpec((B, v_tile), lambda k: (0, k)),     # prev-scores tile
            pl.BlockSpec((v_tile, Ep), lambda k: (k, 0)),    # emb-table tile
            _resident_spec((B, Ep)),                         # embs
            _resident_spec((Ep, Ep)),                        # ge_w1
            _resident_spec((Ep, Ep)),                        # ge_w2
            _resident_spec((1, Ep)),                         # ge_b
            _resident_spec((L, B, Hp)),                      # state
        ]
        for lp in prep["layers"]:
            in_specs += [_resident_spec(lp["w_ih"].shape),
                         _resident_spec((Hp, 3 * Hp)),
                         _resident_spec((1, 3 * Hp)),
                         _resident_spec((1, 3 * Hp))]
        new_state_p, rnn_out = pl.pallas_call(
            functools.partial(_decode_step_kernel, num_layers=L, vocab=V,
                              inv_tau=float(1.0 / tau)),
            grid=(nv,),
            in_specs=in_specs,
            out_specs=(_resident_spec((L, B, Hp)), _resident_spec((B, Hp))),
            out_shape=out_shapes,
            scratch_shapes=[pltpu.VMEM((B, 1), f32),     # online-softmax max
                            pltpu.VMEM((B, 1), f32),     # online-softmax sum
                            pltpu.VMEM((B, Ep), f32)],   # emb_avg accumulator
            input_output_aliases={state_idx: 0},         # in-place state update
            compiler_params=pltpu.CompilerParams(
                dimension_semantics=("arbitrary",),      # vocab K-reduction
                vmem_limit_bytes=32 * 1024 * 1024),
        )(*inputs)

    # ---- compute_score: vocab N-split, fully parallel across tiles ---------
    scores_p = pl.pallas_call(
        _score_kernel,
        grid=(nv,),
        in_specs=[_resident_spec((B, Hp)),
                  pl.BlockSpec((Hp, v_tile), lambda j: (0, j)),
                  pl.BlockSpec((1, v_tile), lambda j: (0, j))],
        out_specs=pl.BlockSpec((B, v_tile), lambda j: (0, j)),
        out_shape=jax.ShapeDtypeStruct((B, Vp), f32),
        compiler_params=pltpu.CompilerParams(
            dimension_semantics=("parallel",),           # shards v7x's 2 TCs
            vmem_limit_bytes=32 * 1024 * 1024),
    )(rnn_out, prep["lin_w_t"], prep["lin_b"])

    attn_weights = None
    # TODO(synk): bahdanau/luong/luong_gate attention and the sgm.mask
    # scatter_ branch are not implemented (attention classes are not in the
    # provided source; the reproduced config uses attention='None', mask=False).
    return scores_p, new_state_p, attn_weights


# ----------------------------------------------------------------------------
# Pure-JAX reference (PyTorch-layout math, same bf16-stored weight values)
# ----------------------------------------------------------------------------
def _reference(token_ids, state, params, prev_output, tau):
    f32 = jnp.float32
    W = params["emb_weight"].astype(f32)
    B = token_ids.shape[0]
    V, E = W.shape
    embs = W[token_ids]
    if prev_output is None:
        prev_output = jnp.zeros((B, V), f32)
    probs = jax.nn.softmax(prev_output.astype(f32) / tau, axis=1)
    emb_avg = probs @ W
    Hg = jax.nn.sigmoid(embs @ params["ge_w1"].astype(f32).T + params["ge_b1"]
                        + emb_avg @ params["ge_w2"].astype(f32).T + params["ge_b2"])
    emb_glb = Hg * embs + (1.0 - Hg) * emb_avg
    x = jnp.concatenate([embs, emb_glb], axis=-1)
    new_h = []
    for l, lp in enumerate(params["gru_layers"]):
        h = state[l].astype(f32)
        gi = x @ lp["w_ih"].astype(f32).T + lp["b_ih"]
        gh = h @ lp["w_hh"].astype(f32).T + lp["b_hh"]
        hid = h.shape[1]
        r = jax.nn.sigmoid(gi[:, :hid] + gh[:, :hid])
        z = jax.nn.sigmoid(gi[:, hid:2 * hid] + gh[:, hid:2 * hid])
        n = jnp.tanh(gi[:, 2 * hid:] + r * gh[:, 2 * hid:])
        x = (1.0 - z) * n + z * h
        new_h.append(x)
    scores = x @ params["lin_w"].astype(f32).T + params["lin_b"]
    return scores, jnp.stack(new_h, axis=0)


# ----------------------------------------------------------------------------
# Main
# ----------------------------------------------------------------------------
if __name__ == "__main__":
    # batch, emb, hidden, tgt_vocab, layers.  V=300 + v_tile=128 exercises
    # multi-tile vocab streaming and the partial-last-tile softmax mask.
    # NOTE: per-step cost is dominated by streaming the vocab weights, which is
    # independent of B -- batch multiple decode streams (B >= 64) in production.
    B, E, Hs, V, L = 8, 32, 32, 300, 2
    TAU = 1.0
    V_TILE = 128
    key = jax.random.PRNGKey(0)
    ks = jax.random.split(key, 16)

    def u(k, shape, scale=0.1):
        return jax.random.uniform(k, shape, jnp.float32, -1.0, 1.0) * scale

    WDT = jnp.bfloat16   # weight storage dtype (halves HBM bytes); biases f32
    params = {
        "emb_weight": u(ks[0], (V, E), 1.0).astype(WDT),
        "ge_w1": u(ks[1], (E, E)).astype(WDT), "ge_b1": u(ks[2], (1, E)),
        "ge_w2": u(ks[3], (E, E)).astype(WDT), "ge_b2": u(ks[4], (1, E)),
        "lin_w": u(ks[5], (V, Hs)).astype(WDT), "lin_b": u(ks[6], (1, V)),
        "gru_layers": [],
    }
    in_size = 2 * E  # global_emb=True -> input_size = 2*hidden_size
    for l in range(L):
        kk = jax.random.split(ks[7 + l], 4)
        params["gru_layers"].append({
            "w_ih": u(kk[0], (3 * Hs, in_size)).astype(WDT),
            "w_hh": u(kk[1], (3 * Hs, Hs)).astype(WDT),
            "b_ih": u(kk[2], (1, 3 * Hs)),
            "b_hh": u(kk[3], (1, 3 * Hs)),
        })
        in_size = Hs

    token_ids = jax.random.randint(ks[12], (B,), 0, V, dtype=jnp.int32)
    state0 = u(ks[13], (L, B, Hs), 0.5)

    prep = prepare_params(params, v_tile=V_TILE)
    Hp = prep["Hp"]
    # pad the decode state ONCE; it stays padded (and in place) across steps
    state0_p = jnp.pad(state0, ((0, 0), (0, 0), (0, Hp - Hs)))

    # tolerance covers bf16 MXU operand rounding (same truncation the f32
    # reference gets from default matmul precision) and the online-softmax
    # reformulation of the tiled emb_avg reduction.
    ATOL = RTOL = 3e-3

    # Step 1: output is None (PyTorch `output is None` first-step branch).
    scores1_p, state1_p, attn1 = rnn_decoder_forward(
        token_ids, state0_p, prep, prev_scores_p=None, tau=TAU)
    jax.block_until_ready(scores1_p)
    jax.block_until_ready(state1_p)
    scores1 = scores1_p[:, :V]
    state1 = state1_p[:, :, :Hs]
    ref_scores1, ref_state1 = _reference(token_ids, state0, params, None, TAU)
    assert attn1 is None
    assert jnp.allclose(scores1, ref_scores1, atol=ATOL, rtol=RTOL)
    assert jnp.allclose(state1, ref_state1, atol=ATOL, rtol=RTOL)

    # Step 2: feed previous (padded) scores back in -> exercises the V-tiled
    # online-softmax / emb_avg reduction path.
    token_ids2 = jax.random.randint(ks[14], (B,), 0, V, dtype=jnp.int32)
    scores2_p, state2_p, attn2 = rnn_decoder_forward(
        token_ids2, state1_p, prep, prev_scores_p=scores1_p, tau=TAU)
    jax.block_until_ready(scores2_p)
    jax.block_until_ready(state2_p)
    ref_scores2, ref_state2 = _reference(token_ids2, state1, params, scores1, TAU)
    assert attn2 is None
    assert jnp.allclose(scores2_p[:, :V], ref_scores2, atol=ATOL, rtol=RTOL)
    assert jnp.allclose(state2_p[:, :, :Hs], ref_state2, atol=ATOL, rtol=RTOL)

    print("KERNEL_OK")
</pallas_src>

<mosaic_0001>
module attributes {stable_mosaic.version = 11 : i64} {
  func.func @_first_step_kernel(%arg0: memref<8x128xbf16, #tpu.memory_space<vmem>>, %arg1: memref<1x128xf32, #tpu.memory_space<vmem>>, %arg2: memref<128x128xbf16, #tpu.memory_space<vmem>>, %arg3: memref<128x128xbf16, #tpu.memory_space<vmem>>, %arg4: memref<1x128xf32, #tpu.memory_space<vmem>>, %arg5: memref<2x8x128xf32, #tpu.memory_space<vmem>>, %arg6: memref<256x384xbf16, #tpu.memory_space<vmem>>, %arg7: memref<128x384xbf16, #tpu.memory_space<vmem>>, %arg8: memref<1x384xf32, #tpu.memory_space<vmem>>, %arg9: memref<1x384xf32, #tpu.memory_space<vmem>>, %arg10: memref<128x384xbf16, #tpu.memory_space<vmem>>, %arg11: memref<128x384xbf16, #tpu.memory_space<vmem>>, %arg12: memref<1x384xf32, #tpu.memory_space<vmem>>, %arg13: memref<1x384xf32, #tpu.memory_space<vmem>>, %arg14: memref<2x8x128xf32, #tpu.memory_space<vmem>>, %arg15: memref<8x128xbf16, #tpu.memory_space<vmem>>) attributes {dimension_semantics = [], scalar_prefetch = 0 : i64, scratch_operands = 0 : i64, tpu.core_type = #tpu.core_type<tc>} {
    %c0 = arith.constant 0 : index
    %c0_0 = arith.constant 0 : index
    %0 = vector.load %arg1[%c0, %c0_0] : memref<1x128xf32, #tpu.memory_space<vmem>>, vector<1x128xf32>
    %1 = vector.shape_cast %0 : vector<1x128xf32> to vector<1x128xf32>
    %2 = vector.broadcast %1 : vector<1x128xf32> to vector<8x128xf32>
    %c0_1 = arith.constant 0 : index
    %c0_2 = arith.constant 0 : index
    %3 = vector.load %arg0[%c0_1, %c0_2] : memref<8x128xbf16, #tpu.memory_space<vmem>>, vector<8x128xbf16>
    %4 = arith.extf %3 : vector<8x128xbf16> to vector<8x128xf32>
    %c0_3 = arith.constant 0 : index
    %c0_4 = arith.constant 0 : index
    %5 = vector.load %arg2[%c0_3, %c0_4] : memref<128x128xbf16, #tpu.memory_space<vmem>>, vector<128x128xbf16>
    %cst = arith.constant dense<0.000000e+00> : vector<8x128xf32>
    %6 = tpu.matmul %3, %5, %cst {dimension_numbers = #tpu.dot_dimension_numbers<[1], [0], [0], [1], [0, 0, 1, 1], [], []>} : vector<8x128xbf16>, vector<128x128xbf16>, vector<8x128xf32> -> vector<8x128xf32>
    %7 = arith.truncf %2 : vector<8x128xf32> to vector<8x128xbf16>
    %c0_5 = arith.constant 0 : index
    %c0_6 = arith.constant 0 : index
    %8 = vector.load %arg3[%c0_5, %c0_6] : memref<128x128xbf16, #tpu.memory_space<vmem>>, vector<128x128xbf16>
    %cst_7 = arith.constant dense<0.000000e+00> : vector<8x128xf32>
    %9 = tpu.matmul %7, %8, %cst_7 {dimension_numbers = #tpu.dot_dimension_numbers<[1], [0], [0], [1], [0, 0, 1, 1], [], []>} : vector<8x128xbf16>, vector<128x128xbf16>, vector<8x128xf32> -> vector<8x128xf32>
    %10 = arith.addf %6, %9 : vector<8x128xf32>
    %c0_8 = arith.constant 0 : index
    %c0_9 = arith.constant 0 : index
    %11 = vector.load %arg4[%c0_8, %c0_9] : memref<1x128xf32, #tpu.memory_space<vmem>>, vector<1x128xf32>
    %12 = vector.broadcast %11 : vector<1x128xf32> to vector<8x128xf32>
    %13 = arith.addf %10, %12 : vector<8x128xf32>
    %14 = arith.negf %13 : vector<8x128xf32>
    %15 = math.exp %14 : vector<8x128xf32>
    %cst_10 = arith.constant 1.000000e+00 : f32
    %16 = vector.broadcast %cst_10 : f32 to vector<8x128xf32>
    %17 = arith.addf %16, %15 : vector<8x128xf32>
    %18 = arith.divf %16, %17 : vector<8x128xf32>
    %19 = arith.mulf %18, %4 : vector<8x128xf32>
    %cst_11 = arith.constant 1.000000e+00 : f32
    %20 = vector.broadcast %cst_11 : f32 to vector<8x128xf32>
    %21 = arith.subf %20, %18 : vector<8x128xf32>
    %22 = arith.mulf %21, %2 : vector<8x128xf32>
    %23 = arith.addf %19, %22 : vector<8x128xf32>
    %24 = tpu.concatenate %4, %23 in 1 : vector<8x128xf32>, vector<8x128xf32> -> vector<8x256xf32>
    %25 = arith.truncf %24 : vector<8x256xf32> to vector<8x256xbf16>
    %c0_12 = arith.constant 0 : index
    %c0_13 = arith.constant 0 : index
    %26 = vector.load %arg6[%c0_12, %c0_13] : memref<256x384xbf16, #tpu.memory_space<vmem>>, vector<256x384xbf16>
    %cst_14 = arith.constant dense<0.000000e+00> : vector<8x384xf32>
    %27 = tpu.matmul %25, %26, %cst_14 {dimension_numbers = #tpu.dot_dimension_numbers<[1], [0], [0], [1], [0, 0, 1, 1], [], []>} : vector<8x256xbf16>, vector<256x384xbf16>, vector<8x384xf32> -> vector<8x384xf32>
    %c0_15 = arith.constant 0 : index
    %c0_16 = arith.constant 0 : index
    %28 = vector.load %arg8[%c0_15, %c0_16] : memref<1x384xf32, #tpu.memory_space<vmem>>, vector<1x384xf32>
    %29 = vector.broadcast %28 : vector<1x384xf32> to vector<8x384xf32>
    %30 = arith.addf %27, %29 : vector<8x384xf32>
    %c0_17 = arith.constant 0 : index
    %c0_18 = arith.constant 0 : index
    %c0_19 = arith.constant 0 : index
    %31 = vector.load %arg5[%c0_17, %c0_18, %c0_19] : memref<2x8x128xf32, #tpu.memory_space<vmem>>, vector<1x8x128xf32>
    %32 = vector.shape_cast %31 : vector<1x8x128xf32> to vector<8x128xf32>
    %33 = arith.truncf %32 : vector<8x128xf32> to vector<8x128xbf16>
    %c0_20 = arith.constant 0 : index
    %c0_21 = arith.constant 0 : index
    %34 = vector.load %arg7[%c0_20, %c0_21] : memref<128x384xbf16, #tpu.memory_space<vmem>>, vector<128x384xbf16>
    %cst_22 = arith.constant dense<0.000000e+00> : vector<8x384xf32>
    %35 = tpu.matmul %33, %34, %cst_22 {dimension_numbers = #tpu.dot_dimension_numbers<[1], [0], [0], [1], [0, 0, 1, 1], [], []>} : vector<8x128xbf16>, vector<128x384xbf16>, vector<8x384xf32> -> vector<8x384xf32>
    %c0_23 = arith.constant 0 : index
    %c0_24 = arith.constant 0 : index
    %36 = vector.load %arg9[%c0_23, %c0_24] : memref<1x384xf32, #tpu.memory_space<vmem>>, vector<1x384xf32>
    %37 = vector.broadcast %36 : vector<1x384xf32> to vector<8x384xf32>
    %38 = arith.addf %35, %37 : vector<8x384xf32>
    %39 = vector.extract_strided_slice %30 {offsets = [0, 0], sizes = [8, 128], strides = [1, 1]} : vector<8x384xf32> to vector<8x128xf32>
    %40 = vector.extract_strided_slice %38 {offsets = [0, 0], sizes = [8, 128], strides = [1, 1]} : vector<8x384xf32> to vector<8x128xf32>
    %41 = arith.addf %39, %40 : vector<8x128xf32>
    %42 = arith.negf %41 : vector<8x128xf32>
    %43 = math.exp %42 : vector<8x128xf32>
    %cst_25 = arith.constant 1.000000e+00 : f32
    %44 = vector.broadcast %cst_25 : f32 to vector<8x128xf32>
    %45 = arith.addf %44, %43 : vector<8x128xf32>
    %46 = arith.divf %44, %45 : vector<8x128xf32>
    %47 = vector.extract_strided_slice %30 {offsets = [0, 128], sizes = [8, 128], strides = [1, 1]} : vector<8x384xf32> to vector<8x128xf32>
    %48 = vector.extract_strided_slice %38 {offsets = [0, 128], sizes = [8, 128], strides = [1, 1]} : vector<8x384xf32> to vector<8x128xf32>
    %49 = arith.addf %47, %48 : vector<8x128xf32>
    %50 = arith.negf %49 : vector<8x128xf32>
    %51 = math.exp %50 : vector<8x128xf32>
    %cst_26 = arith.constant 1.000000e+00 : f32
    %52 = vector.broadcast %cst_26 : f32 to vector<8x128xf32>
    %53 = arith.addf %52, %51 : vector<8x128xf32>
    %54 = arith.divf %52, %53 : vector<8x128xf32>
    %55 = vector.extract_strided_slice %30 {offsets = [0, 256], sizes = [8, 128], strides = [1, 1]} : vector<8x384xf32> to vector<8x128xf32>
    %56 = vector.extract_strided_slice %38 {offsets = [0, 256], sizes = [8, 128], strides = [1, 1]} : vector<8x384xf32> to vector<8x128xf32>
    %57 = arith.mulf %46, %56 : vector<8x128xf32>
    %58 = arith.addf %55, %57 : vector<8x128xf32>
    %59 = math.tanh %58 : vector<8x128xf32>
    %cst_27 = arith.constant 1.000000e+00 : f32
    %60 = vector.broadcast %cst_27 : f32 to vector<8x128xf32>
    %61 = arith.subf %60, %54 : vector<8x128xf32>
    %62 = arith.mulf %61, %59 : vector<8x128xf32>
    %63 = arith.mulf %54, %32 : vector<8x128xf32>
    %64 = arith.addf %62, %63 : vector<8x128xf32>
    %c0_28 = arith.constant 0 : index
    %c0_29 = arith.constant 0 : index
    %c0_30 = arith.constant 0 : index
    %65 = vector.load %arg14[%c0_28, %c0_29, %c0_30] : memref<2x8x128xf32, #tpu.memory_space<vmem>>, vector<1x8x128xf32>
    %66 = vector.shape_cast %65 : vector<1x8x128xf32> to vector<8x128xf32>
    %67 = vector.shape_cast %64 : vector<8x128xf32> to vector<1x8x128xf32>
    tpu.vector_store %arg14[%c0_28, %c0_29, %c0_30], %67 {strides = array<i32>} : memref<2x8x128xf32, #tpu.memory_space<vmem>>, vector<1x8x128xf32>,
    %68 = arith.truncf %64 : vector<8x128xf32> to vector<8x128xbf16>
    %c0_31 = arith.constant 0 : index
    %c0_32 = arith.constant 0 : index
    %69 = vector.load %arg10[%c0_31, %c0_32] : memref<128x384xbf16, #tpu.memory_space<vmem>>, vector<128x384xbf16>
    %cst_33 = arith.constant dense<0.000000e+00> : vector<8x384xf32>
    %70 = tpu.matmul %68, %69, %cst_33 {dimension_numbers = #tpu.dot_dimension_numbers<[1], [0], [0], [1], [0, 0, 1, 1], [], []>} : vector<8x128xbf16>, vector<128x384xbf16>, vector<8x384xf32> -> vector<8x384xf32>
    %c0_34 = arith.constant 0 : index
    %c0_35 = arith.constant 0 : index
    %71 = vector.load %arg12[%c0_34, %c0_35] : memref<1x384xf32, #tpu.memory_space<vmem>>, vector<1x384xf32>
    %72 = vector.broadcast %71 : vector<1x384xf32> to vector<8x384xf32>
    %73 = arith.addf %70, %72 : vector<8x384xf32>
    %c1 = arith.constant 1 : index
    %c0_36 = arith.constant 0 : index
    %c0_37 = arith.constant 0 : index
    %74 = vector.load %arg5[%c1, %c0_36, %c0_37] : memref<2x8x128xf32, #tpu.memory_space<vmem>>, vector<1x8x128xf32>
    %75 = vector.shape_cast %74 : vector<1x8x128xf32> to vector<8x128xf32>
    %76 = arith.truncf %75 : vector<8x128xf32> to vector<8x128xbf16>
    %c0_38 = arith.constant 0 : index
    %c0_39 = arith.constant 0 : index
    %77 = vector.load %arg11[%c0_38, %c0_39] : memref<128x384xbf16, #tpu.memory_space<vmem>>, vector<128x384xbf16>
    %cst_40 = arith.constant dense<0.000000e+00> : vector<8x384xf32>
    %78 = tpu.matmul %76, %77, %cst_40 {dimension_numbers = #tpu.dot_dimension_numbers<[1], [0], [0], [1], [0, 0, 1, 1], [], []>} : vector<8x128xbf16>, vector<128x384xbf16>, vector<8x384xf32> -> vector<8x384xf32>
    %c0_41 = arith.constant 0 : index
    %c0_42 = arith.constant 0 : index
    %79 = vector.load %arg13[%c0_41, %c0_42] : memref<1x384xf32, #tpu.memory_space<vmem>>, vector<1x384xf32>
    %80 = vector.broadcast %79 : vector<1x384xf32> to vector<8x384xf32>
    %81 = arith.addf %78, %80 : vector<8x384xf32>
    %82 = vector.extract_strided_slice %73 {offsets = [0, 0], sizes = [8, 128], strides = [1, 1]} : vector<8x384xf32> to vector<8x128xf32>
    %83 = vector.extract_strided_slice %81 {offsets = [0, 0], sizes = [8, 128], strides = [1, 1]} : vector<8x384xf32> to vector<8x128xf32>
    %84 = arith.addf %82, %83 : vector<8x128xf32>
    %85 = arith.negf %84 : vector<8x128xf32>
    %86 = math.exp %85 : vector<8x128xf32>
    %cst_43 = arith.constant 1.000000e+00 : f32
    %87 = vector.broadcast %cst_43 : f32 to vector<8x128xf32>
    %88 = arith.addf %87, %86 : vector<8x128xf32>
    %89 = arith.divf %87, %88 : vector<8x128xf32>
    %90 = vector.extract_strided_slice %73 {offsets = [0, 128], sizes = [8, 128], strides = [1, 1]} : vector<8x384xf32> to vector<8x128xf32>
    %91 = vector.extract_strided_slice %81 {offsets = [0, 128], sizes = [8, 128], strides = [1, 1]} : vector<8x384xf32> to vector<8x128xf32>
    %92 = arith.addf %90, %91 : vector<8x128xf32>
    %93 = arith.negf %92 : vector<8x128xf32>
    %94 = math.exp %93 : vector<8x128xf32>
    %cst_44 = arith.constant 1.000000e+00 : f32
    %95 = vector.broadcast %cst_44 : f32 to vector<8x128xf32>
    %96 = arith.addf %95, %94 : vector<8x128xf32>
    %97 = arith.divf %95, %96 : vector<8x128xf32>
    %98 = vector.extract_strided_slice %73 {offsets = [0, 256], sizes = [8, 128], strides = [1, 1]} : vector<8x384xf32> to vector<8x128xf32>
    %99 = vector.extract_strided_slice %81 {offsets = [0, 256], sizes = [8, 128], strides = [1, 1]} : vector<8x384xf32> to vector<8x128xf32>
    %100 = arith.mulf %89, %99 : vector<8x128xf32>
    %101 = arith.addf %98, %100 : vector<8x128xf32>
    %102 = math.tanh %101 : vector<8x128xf32>
    %cst_45 = arith.constant 1.000000e+00 : f32
    %103 = vector.broadcast %cst_45 : f32 to vector<8x128xf32>
    %104 = arith.subf %103, %97 : vector<8x128xf32>
    %105 = arith.mulf %104, %102 : vector<8x128xf32>
    %106 = arith.mulf %97, %75 : vector<8x128xf32>
    %107 = arith.addf %105, %106 : vector<8x128xf32>
    %c1_46 = arith.constant 1 : index
    %c0_47 = arith.constant 0 : index
    %c0_48 = arith.constant 0 : index
    %108 = vector.load %arg14[%c1_46, %c0_47, %c0_48] : memref<2x8x128xf32, #tpu.memory_space<vmem>>, vector<1x8x128xf32>
    %109 = vector.shape_cast %108 : vector<1x8x128xf32> to vector<8x128xf32>
    %110 = vector.shape_cast %107 : vector<8x128xf32> to vector<1x8x128xf32>
    tpu.vector_store %arg14[%c1_46, %c0_47, %c0_48], %110 {strides = array<i32>} : memref<2x8x128xf32, #tpu.memory_space<vmem>>, vector<1x8x128xf32>,
    %111 = arith.truncf %107 : vector<8x128xf32> to vector<8x128xbf16>
    %c0_49 = arith.constant 0 : index
    %c0_50 = arith.constant 0 : index
    %112 = vector.load %arg15[%c0_49, %c0_50] : memref<8x128xbf16, #tpu.memory_space<vmem>>, vector<8x128xbf16>
    tpu.vector_store %arg15[%c0_49, %c0_50], %111 {strides = array<i32>} : memref<8x128xbf16, #tpu.memory_space<vmem>>, vector<8x128xbf16>,
    return
  }
}

</mosaic_0001>

<llo_original>
// kernel: tpu_custom_call.1
$region0: #{tpu_custom_call.1}
  #allocation0 [shape = 'u32[]', space=smem, size = 0x4, offset = 0x4, fixed_abs, tag = 'smem constant byte address 0x4 - core index']
  #allocation1 [shape = 'u32[144,128]{1,0:T(1,128)}', space=vmem, size = 0x12000, scoped, tag = 'internal scratch']
  %s0 = inlined_call_operand.vmem [shape: bf16[8,128], index: 0, kind: input, shape index: {}]
  %s1 = inlined_call_operand.vmem [shape: f32[1,128], index: 1, kind: input, shape index: {}]
  %s2 = inlined_call_operand.hbm [shape: bf16[128,128], index: 2, kind: input, shape index: {}]
  %s3 = inlined_call_operand.hbm [shape: bf16[128,128], index: 3, kind: input, shape index: {}]
  %s4 = inlined_call_operand.vmem [shape: f32[1,128], index: 4, kind: input, shape index: {}]
  %s5 = inlined_call_operand.hbm [shape: f32[2,8,128], index: 5, kind: input, shape index: {}, may-alias: {5,14}]
  %s6 = inlined_call_operand.hbm [shape: bf16[256,384], index: 6, kind: input, shape index: {}]
  %s7 = inlined_call_operand.hbm [shape: bf16[128,384], index: 7, kind: input, shape index: {}]
  %s8 = inlined_call_operand.vmem [shape: f32[1,384], index: 8, kind: input, shape index: {}]
  %s9 = inlined_call_operand.vmem [shape: f32[1,384], index: 9, kind: input, shape index: {}]
  %s10 = inlined_call_operand.hbm [shape: bf16[128,384], index: 10, kind: input, shape index: {}]
  %s11 = inlined_call_operand.hbm [shape: bf16[128,384], index: 11, kind: input, shape index: {}]
  %s12 = inlined_call_operand.vmem [shape: f32[1,384], index: 12, kind: input, shape index: {}]
  %s13 = inlined_call_operand.vmem [shape: f32[1,384], index: 13, kind: input, shape index: {}]
  %s14 = inlined_call_operand.hbm [shape: f32[2,8,128], index: 14, kind: output, shape index: {0}, may-alias: {5,14}]
  %s15 = inlined_call_operand.hbm [shape: bf16[8,128], index: 15, kind: output, shape index: {1}]
  %16 = xla_tuple %s14, %s15
  %s17 = sld [smem:[#allocation0]]
  $region102: #{tpu_custom_call.1} parent=0
    _
  %s19 = ssub.s32 1, %s17
  %s20 = scalar_select 0, %s19, %s17
  $region1: #{tpu_custom_call.1} parent=0
    #allocation2 [shape = 'u8[32768]{0}', space=vmem, size = 0x8000, scoped, tag = 'input window, operand 2, single buffered']
    #allocation3 [shape = 's32[1]{0}', space=sflag, size = 0x4, scoped, tag = 'scoped memory for tpu_custom_call.1']
    #allocation4 [shape = 's32[1]{0}', space=sflag, size = 0x4, scoped, tag = 'scoped memory for tpu_custom_call.1']
    #allocation5 [shape = 'u8[32768]{0}', space=vmem, size = 0x8000, scoped, tag = 'input window, operand 3, single buffered']
    #allocation6 [shape = 's32[1]{0}', space=sflag, size = 0x4, scoped, tag = 'scoped memory for tpu_custom_call.1']
    #allocation7 [shape = 'u8[8192]{0}', space=vmem, size = 0x2000, scoped, tag = 'input window, operand 5, single buffered']
    #allocation8 [shape = 'u8[196608]{0}', space=vmem, size = 0x30000, scoped, tag = 'input window, operand 6, single buffered']
    #allocation9 [shape = 's32[1]{0}', space=sflag, size = 0x4, scoped, tag = 'scoped memory for tpu_custom_call.1']
    #allocation10 [shape = 'u8[98304]{0}', space=vmem, size = 0x18000, scoped, tag = 'input window, operand 7, single buffered']
    #allocation11 [shape = 'u8[98304]{0}', space=vmem, size = 0x18000, scoped, tag = 'input window, operand 10, single buffered']
    #allocation12 [shape = 's32[1]{0}', space=sflag, size = 0x4, scoped, tag = 'scoped memory for tpu_custom_call.1']
    #allocation13 [shape = 'u8[98304]{0}', space=vmem, size = 0x18000, scoped, tag = 'input window, operand 11, single buffered']
    #allocation14 [shape = 'u8[8192]{0}', space=vmem, size = 0x2000, scoped, tag = 'output window, operand 0, single buffered']
    #allocation15 [shape = 'u8[2048]{0}', space=vmem, size = 0x800, scoped, tag = 'output window, operand 1, single buffered']
    #allocation16 [shape = 's32[1]{0}', space=sflag, size = 0x4, scoped, tag = 'scoped memory for tpu_custom_call.1']
    %21 = vsyncpa [#allocation3], 0
    %22 = vsyncpa [#allocation6], 0
    %23 = vsyncpa [#allocation9], 0
    %24 = vsyncpa [#allocation12], 0
    %25 = vsyncpa [#allocation4], 0
    %26 = vsyncpa [#allocation16], 0
    // Predicated region
    $region2: #{tpu_custom_call.1} parent=1 // pred_check
      _
    $region3: #{tpu_custom_call.1} parent=1 // pred_check_branch
      %28 = sbr.rel (0) target = $region5
    $region4: #{tpu_custom_call.1} parent=1 // pred_region
      _
    $region5: #{tpu_custom_call.1} parent=1 // pred_fallthru
      _
    // Predicated region
    $region6: #{tpu_custom_call.1} parent=1 // pred_check
      _
    $region7: #{tpu_custom_call.1} parent=1 // pred_check_branch
      %30 = sbr.rel (0) target = $region9
    $region8: #{tpu_custom_call.1} parent=1 // pred_region
      _
    $region9: #{tpu_custom_call.1} parent=1 // pred_fallthru
      _
    // Predicated region
    $region10: #{tpu_custom_call.1} parent=1 // pred_check
      _
    $region11: #{tpu_custom_call.1} parent=1 // pred_check_branch
      %32 = sbr.rel (0) target = $region13
    $region12: #{tpu_custom_call.1} parent=1 // pred_region
      %s34 = ssub.s32 1024, 1024
      %35 = vsyncadd [#allocation3], %s34
      %s36 = sshll.u32 [#allocation2], 4
      %s37 = int_to_ptr.vmem [resolvable:$true] %s36
      %42 = dma.hbm_to_vmem [thread:$0]  %s2, 1024, %s37, [#allocation3], 64, 64, 4
    $region13: #{tpu_custom_call.1} parent=1 // pred_fallthru
      _
    // Predicated region
    $region14: #{tpu_custom_call.1} parent=1 // pred_check
      _
    $region15: #{tpu_custom_call.1} parent=1 // pred_check_branch
      %44 = sbr.rel (0) target = $region17
    $region16: #{tpu_custom_call.1} parent=1 // pred_region
      %s46 = ssub.s32 1024, 1024
      %47 = vsyncadd [#allocation6], %s46
      %s48 = sshll.u32 [#allocation5], 4
      %s49 = int_to_ptr.vmem [resolvable:$true] %s48
      %54 = dma.hbm_to_vmem [thread:$0]  %s3, 1024, %s49, [#allocation6], 64, 64, 4
    $region17: #{tpu_custom_call.1} parent=1 // pred_fallthru
      _
    // Predicated region
    $region18: #{tpu_custom_call.1} parent=1 // pred_check
      _
    $region19: #{tpu_custom_call.1} parent=1 // pred_check_branch
      %56 = sbr.rel (0) target = $region21
    $region20: #{tpu_custom_call.1} parent=1 // pred_region
      _
    $region21: #{tpu_custom_call.1} parent=1 // pred_fallthru
      _
    // Predicated region
    $region22: #{tpu_custom_call.1} parent=1 // pred_check
      _
    $region23: #{tpu_custom_call.1} parent=1 // pred_check_branch
      %58 = sbr.rel (0) target = $region25
    $region24: #{tpu_custom_call.1} parent=1 // pred_region
      %s60 = ssub.s32 256, 256
      %61 = vsyncadd [#allocation6], %s60
      %s62 = sshll.u32 [#allocation7], 4
      %s63 = int_to_ptr.vmem [resolvable:$true] %s62
      %68 = dma.hbm_to_vmem [thread:$0]  %s5, 256, %s63, [#allocation6], 128, 128, 8
    $region25: #{tpu_custom_call.1} parent=1 // pred_fallthru
      _
    // Predicated region
    $region26: #{tpu_custom_call.1} parent=1 // pred_check
      _
    $region27: #{tpu_custom_call.1} parent=1 // pred_check_branch
      %70 = sbr.rel (0) target = $region29
    $region28: #{tpu_custom_call.1} parent=1 // pred_region
      %s72 = ssub.s32 6144, 6144
      %73 = vsyncadd [#allocation9], %s72
      %s74 = sshll.u32 [#allocation8], 4
      %s75 = int_to_ptr.vmem [resolvable:$true] %s74
      %80 = dma.hbm_to_vmem [thread:$0]  %s6, 6144, %s75, [#allocation9], 192, 192, 12
    $region29: #{tpu_custom_call.1} parent=1 // pred_fallthru
      _
    // Predicated region
    $region30: #{tpu_custom_call.1} parent=1 // pred_check
      _
    $region31: #{tpu_custom_call.1} parent=1 // pred_check_branch
      %82 = sbr.rel (0) target = $region33
    $region32: #{tpu_custom_call.1} parent=1 // pred_region
      %s84 = ssub.s32 3072, 3072
      %85 = vsyncadd [#allocation9], %s84
      %s86 = sshll.u32 [#allocation10], 4
      %s87 = int_to_ptr.vmem [resolvable:$true] %s86
      %92 = dma.hbm_to_vmem [thread:$0]  %s7, 3072, %s87, [#allocation9], 192, 192, 12
    $region33: #{tpu_custom_call.1} parent=1 // pred_fallthru
      _
    // Predicated region
    $region34: #{tpu_custom_call.1} parent=1 // pred_check
      _
    $region35: #{tpu_custom_call.1} parent=1 // pred_check_branch
      %94 = sbr.rel (0) target = $region37
    $region36: #{tpu_custom_call.1} parent=1 // pred_region
      _
    $region37: #{tpu_custom_call.1} parent=1 // pred_fallthru
      _
    // Predicated region
    $region38: #{tpu_custom_call.1} parent=1 // pred_check
      _
    $region39: #{tpu_custom_call.1} parent=1 // pred_check_branch
      %96 = sbr.rel (0) target = $region41
    $region40: #{tpu_custom_call.1} parent=1 // pred_region
      _
    $region41: #{tpu_custom_call.1} parent=1 // pred_fallthru
      _
    // Predicated region
    $region42: #{tpu_custom_call.1} parent=1 // pred_check
      _
    $region43: #{tpu_custom_call.1} parent=1 // pred_check_branch
      %98 = sbr.rel (0) target = $region45
    $region44: #{tpu_custom_call.1} parent=1 // pred_region
      %s100 = ssub.s32 3072, 3072
      %101 = vsyncadd [#allocation12], %s100
      %s102 = sshll.u32 [#allocation11], 4
      %s103 = int_to_ptr.vmem [resolvable:$true] %s102
      %108 = dma.hbm_to_vmem [thread:$0]  %s10, 3072, %s103, [#allocation12], 192, 192, 12
    $region45: #{tpu_custom_call.1} parent=1 // pred_fallthru
      _
    // Predicated region
    $region46: #{tpu_custom_call.1} parent=1 // pred_check
      _
    $region47: #{tpu_custom_call.1} parent=1 // pred_check_branch
      %110 = sbr.rel (0) target = $region49
    $region48: #{tpu_custom_call.1} parent=1 // pred_region
      %s112 = ssub.s32 3072, 3072
      %113 = vsyncadd [#allocation12], %s112
      %s114 = sshll.u32 [#allocation13], 4
      %s115 = int_to_ptr.vmem [resolvable:$true] %s114
      %120 = dma.hbm_to_vmem [thread:$0]  %s11, 3072, %s115, [#allocation12], 192, 192, 12
    $region49: #{tpu_custom_call.1} parent=1 // pred_fallthru
      _
    // Predicated region
    $region50: #{tpu_custom_call.1} parent=1 // pred_check
      _
    $region51: #{tpu_custom_call.1} parent=1 // pred_check_branch
      %122 = sbr.rel (0) target = $region53
    $region52: #{tpu_custom_call.1} parent=1 // pred_region
      _
    $region53: #{tpu_custom_call.1} parent=1 // pred_fallthru
      _
    // Predicated region
    $region54: #{tpu_custom_call.1} parent=1 // pred_check
      _
    $region55: #{tpu_custom_call.1} parent=1 // pred_check_branch
      %124 = sbr.rel (0) target = $region57
    $region56: #{tpu_custom_call.1} parent=1 // pred_region
      _
    $region57: #{tpu_custom_call.1} parent=1 // pred_fallthru
      _
    // Predicated region
    $region58: #{tpu_custom_call.1} parent=1 // pred_check
      _
    $region59: #{tpu_custom_call.1} parent=1 // pred_check_branch
      %126 = sbr.rel (0) target = $region61
    $region60: #{tpu_custom_call.1} parent=1 // pred_region
      %127 = dma.done [#allocation3], 1024
    $region61: #{tpu_custom_call.1} parent=1 // pred_fallthru
      _
    // Predicated region
    $region62: #{tpu_custom_call.1} parent=1 // pred_check
      _
    $region63: #{tpu_custom_call.1} parent=1 // pred_check_branch
      %129 = sbr.rel (0) target = $region65
    $region64: #{tpu_custom_call.1} parent=1 // pred_region
      %130 = dma.done [#allocation6], 1024
    $region65: #{tpu_custom_call.1} parent=1 // pred_fallthru
      _
    // Predicated region
    $region66: #{tpu_custom_call.1} parent=1 // pred_check
      _
    $region67: #{tpu_custom_call.1} parent=1 // pred_check_branch
      %132 = sbr.rel (0) target = $region69
    $region68: #{tpu_custom_call.1} parent=1 // pred_region
      %133 = dma.done [#allocation6], 256
    $region69: #{tpu_custom_call.1} parent=1 // pred_fallthru
      _
    // Predicated region
    $region70: #{tpu_custom_call.1} parent=1 // pred_check
      _
    $region71: #{tpu_custom_call.1} parent=1 // pred_check_branch
      %135 = sbr.rel (0) target = $region73
    $region72: #{tpu_custom_call.1} parent=1 // pred_region
      %136 = dma.done [#allocation9], 6144
    $region73: #{tpu_custom_call.1} parent=1 // pred_fallthru
      _
    // Predicated region
    $region74: #{tpu_custom_call.1} parent=1 // pred_check
      _
    $region75: #{tpu_custom_call.1} parent=1 // pred_check_branch
      %138 = sbr.rel (0) target = $region77
    $region76: #{tpu_custom_call.1} parent=1 // pred_region
      %139 = dma.done [#allocation9], 3072
    $region77: #{tpu_custom_call.1} parent=1 // pred_fallthru
      _
    // Predicated region
    $region78: #{tpu_custom_call.1} parent=1 // pred_check
      _
    $region79: #{tpu_custom_call.1} parent=1 // pred_check_branch
      %141 = sbr.rel (0) target = $region81
    $region80: #{tpu_custom_call.1} parent=1 // pred_region
      %142 = dma.done [#allocation12], 3072
    $region81: #{tpu_custom_call.1} parent=1 // pred_fallthru
      _
    // Predicated region
    $region82: #{tpu_custom_call.1} parent=1 // pred_check
      _
    $region83: #{tpu_custom_call.1} parent=1 // pred_check_branch
      %144 = sbr.rel (0) target = $region85
    $region84: #{tpu_custom_call.1} parent=1 // pred_region
      %145 = dma.done [#allocation12], 3072
    $region85: #{tpu_custom_call.1} parent=1 // pred_fallthru
      _
    %v147 = vld [vmem:[%s1] sm:$0x1]
    %v149 = vlaneseq
    %v150 = vshrl.u32 %v149, 7
    %v151 = vsub.s32 0, %v150
    %v152 = vrot.slane %v147, %v151
    %v154 = vld [vmem:[%s0] sm:$0xf]
    %v155 = vunpack.c.l.bf16 %v154
    %v156 = vld [vmem:[#allocation2] sm:$0xf]
    %v157 = vld [vmem:[#allocation2 + $0x4] sm:$0xf]
    %v158 = vld [vmem:[#allocation2 + $0x8] sm:$0xf]
    %v159 = vld [vmem:[#allocation2 + $0xc] sm:$0xf]
    %v160 = vld [vmem:[#allocation2 + $0x10] sm:$0xf]
    %v161 = vld [vmem:[#allocation2 + $0x14] sm:$0xf]
    %v162 = vld [vmem:[#allocation2 + $0x18] sm:$0xf]
    %v163 = vld [vmem:[#allocation2 + $0x1c] sm:$0xf]
    %v164 = vld [vmem:[#allocation2 + $0x20] sm:$0xf]
    %v165 = vld [vmem:[#allocation2 + $0x24] sm:$0xf]
    %v166 = vld [vmem:[#allocation2 + $0x28] sm:$0xf]
    %v167 = vld [vmem:[#allocation2 + $0x2c] sm:$0xf]
    %v168 = vld [vmem:[#allocation2 + $0x30] sm:$0xf]
    %v169 = vld [vmem:[#allocation2 + $0x34] sm:$0xf]
    %v170 = vld [vmem:[#allocation2 + $0x38] sm:$0xf]
    %v171 = vld [vmem:[#allocation2 + $0x3c] sm:$0xf]
    %v172 = vpack.c.bf16 %v152, %v152
    %v173 = vld [vmem:[#allocation5] sm:$0xf]
    %v174 = vld [vmem:[#allocation5 + $0x4] sm:$0xf]
    %v175 = vld [vmem:[#allocation5 + $0x8] sm:$0xf]
    %v176 = vld [vmem:[#allocation5 + $0xc] sm:$0xf]
    %v177 = vld [vmem:[#allocation5 + $0x10] sm:$0xf]
    %v178 = vld [vmem:[#allocation5 + $0x14] sm:$0xf]
    %v179 = vld [vmem:[#allocation5 + $0x18] sm:$0xf]
    %v180 = vld [vmem:[#allocation5 + $0x1c] sm:$0xf]
    %v181 = vld [vmem:[#allocation5 + $0x20] sm:$0xf]
    %v182 = vld [vmem:[#allocation5 + $0x24] sm:$0xf]
    %v183 = vld [vmem:[#allocation5 + $0x28] sm:$0xf]
    %v184 = vld [vmem:[#allocation5 + $0x2c] sm:$0xf]
    %v185 = vld [vmem:[#allocation5 + $0x30] sm:$0xf]
    %v186 = vld [vmem:[#allocation5 + $0x34] sm:$0xf]
    %v187 = vld [vmem:[#allocation5 + $0x38] sm:$0xf]
    %v188 = vld [vmem:[#allocation5 + $0x3c] sm:$0xf]
    %v205 = vunpack.c.l.b16 %v173
    %v206 = vunpack.c.l.b16 %v174
    %v207 = vunpack.c.l.b16 %v175
    %v208 = vunpack.c.l.b16 %v176
    %v209 = vunpack.c.l.b16 %v177
    %v210 = vunpack.c.l.b16 %v178
    %v211 = vunpack.c.l.b16 %v179
    %v212 = vunpack.c.l.b16 %v180
    %v213 = vunpack.c.l.b16 %v181
    %v214 = vunpack.c.l.b16 %v182
    %v215 = vunpack.c.l.b16 %v183
    %v216 = vunpack.c.l.b16 %v184
    %v217 = vunpack.c.l.b16 %v185
    %v218 = vunpack.c.l.b16 %v186
    %v219 = vunpack.c.l.b16 %v187
    %v220 = vunpack.c.l.b16 %v188
    %v221 = vpack.c.b16 %v206, %v205
    %v222 = vpack.c.b16 %v208, %v207
    %v223 = vpack.c.b16 %v210, %v209
    %v224 = vpack.c.b16 %v212, %v211
    %v225 = vpack.c.b16 %v214, %v213
    %v226 = vpack.c.b16 %v216, %v215
    %v227 = vpack.c.b16 %v218, %v217
    %v228 = vpack.c.b16 %v220, %v219
    %237 = vmatprep.subr.bf16.mxu0 0
    %238 = vmatpush1.bf16.msra.mxu0 %v228
    %239 = vmatprep.subr.bf16.mxu0 0
    %240 = vmatpush1.bf16.msra.mxu0 %v227
    %241 = vmatprep.subr.bf16.mxu0 0
    %242 = vmatpush1.bf16.msra.mxu0 %v226
    %243 = vmatprep.subr.bf16.mxu0 0
    %244 = vmatpush1.bf16.msra.mxu0 %v225
    %245 = vmatprep.subr.bf16.mxu0 0
    %246 = vmatpush1.bf16.msra.mxu0 %v224
    %247 = vmatprep.subr.bf16.mxu0 0
    %248 = vmatpush1.bf16.msra.mxu0 %v223
    %249 = vmatprep.subr.bf16.mxu0 0
    %250 = vmatpush1.bf16.msra.mxu0 %v222
    %251 = vmatprep.subr.bf16.mxu0 0
    %252 = vmatpush1.bf16.msra.mxu0 %v221
    %253 = vmatprep.subr.bf16.mxu0 0
    %254 = vmatpush2.bf16.msra.mxu0 0
    %255 = vmatprep.subr.bf16.mxu0 0
    %256 = vmatpush2.bf16.msra.mxu0 0
    %257 = vmatprep.subr.bf16.mxu0 0
    %258 = vmatpush2.bf16.msra.mxu0 0
    %259 = vmatprep.subr.bf16.mxu0 0
    %260 = vmatpush2.bf16.msra.mxu0 0
    %261 = vmatprep.subr.bf16.mxu0 0
    %262 = vmatpush2.bf16.msra.mxu0 0
    %263 = vmatprep.subr.bf16.mxu0 0
    %264 = vmatpush2.bf16.msra.mxu0 0
    %265 = vmatprep.subr.bf16.mxu0 0
    %266 = vmatpush2.bf16.msra.mxu0 0
    %267 = vmatprep.subr.bf16.mxu0 0
    %268 = vmatpush2.bf16.msra.mxu0 0
    %269 = vmatprep.mubr.bf16.mxu0 0
    %270 = vmatmul.mubr.bf16.gmra.mxu0 %v172
    %v271 = vpop.f32.mrf.mxu0
    %v272 = vadd.f32 0.0, %v271
    %v273 = vpop.f32.mrf.mxu0
    %v274 = vpop.f32.mrf.mxu0
    %v275 = vpop.f32.mrf.mxu0
    %276 = vdwg.mxu0
    %v293 = vunpack.c.l.b16 %v156
    %v294 = vunpack.c.l.b16 %v157
    %v295 = vunpack.c.l.b16 %v158
    %v296 = vunpack.c.l.b16 %v159
    %v297 = vunpack.c.l.b16 %v160
    %v298 = vunpack.c.l.b16 %v161
    %v299 = vunpack.c.l.b16 %v162
    %v300 = vunpack.c.l.b16 %v163
    %v301 = vunpack.c.l.b16 %v164
    %v302 = vunpack.c.l.b16 %v165
    %v303 = vunpack.c.l.b16 %v166
    %v304 = vunpack.c.l.b16 %v167
    %v305 = vunpack.c.l.b16 %v168
    %v306 = vunpack.c.l.b16 %v169
    %v307 = vunpack.c.l.b16 %v170
    %v308 = vunpack.c.l.b16 %v171
    %v309 = vpack.c.b16 %v294, %v293
    %v310 = vpack.c.b16 %v296, %v295
    %v311 = vpack.c.b16 %v298, %v297
    %v312 = vpack.c.b16 %v300, %v299
    %v313 = vpack.c.b16 %v302, %v301
    %v314 = vpack.c.b16 %v304, %v303
    %v315 = vpack.c.b16 %v306, %v305
    %v316 = vpack.c.b16 %v308, %v307
    %325 = vmatprep.subr.bf16.mxu0 0
    %326 = vmatpush1.bf16.msra.mxu0 %v316
    %327 = vmatprep.subr.bf16.mxu0 0
    %328 = vmatpush1.bf16.msra.mxu0 %v315
    %329 = vmatprep.subr.bf16.mxu0 0
    %330 = vmatpush1.bf16.msra.mxu0 %v314
    %331 = vmatprep.subr.bf16.mxu0 0
    %332 = vmatpush1.bf16.msra.mxu0 %v313
    %333 = vmatprep.subr.bf16.mxu0 0
    %334 = vmatpush1.bf16.msra.mxu0 %v312
    %335 = vmatprep.subr.bf16.mxu0 0
    %336 = vmatpush1.bf16.msra.mxu0 %v311
    %337 = vmatprep.subr.bf16.mxu0 0
    %338 = vmatpush1.bf16.msra.mxu0 %v310
    %339 = vmatprep.subr.bf16.mxu0 0
    %340 = vmatpush1.bf16.msra.mxu0 %v309
    %341 = vmatprep.subr.bf16.mxu0 0
    %342 = vmatpush2.bf16.msra.mxu0 0
    %343 = vmatprep.subr.bf16.mxu0 0
    %344 = vmatpush2.bf16.msra.mxu0 0
    %345 = vmatprep.subr.bf16.mxu0 0
    %346 = vmatpush2.bf16.msra.mxu0 0
    %347 = vmatprep.subr.bf16.mxu0 0
    %348 = vmatpush2.bf16.msra.mxu0 0
    %349 = vmatprep.subr.bf16.mxu0 0
    %350 = vmatpush2.bf16.msra.mxu0 0
    %351 = vmatprep.subr.bf16.mxu0 0
    %352 = vmatpush2.bf16.msra.mxu0 0
    %353 = vmatprep.subr.bf16.mxu0 0
    %354 = vmatpush2.bf16.msra.mxu0 0
    %355 = vmatprep.subr.bf16.mxu0 0
    %356 = vmatpush2.bf16.msra.mxu0 0
    %357 = vmatprep.mubr.bf16.mxu0 0
    %358 = vmatmul.mubr.bf16.gmra.mxu0 %v154
    %v359 = vpop.f32.mrf.mxu0
    %v360 = vadd.f32 %v272, %v359
    %v361 = vpop.f32.mrf.mxu0
    %v362 = vpop.f32.mrf.mxu0
    %v363 = vpop.f32.mrf.mxu0
    %364 = vdwg.mxu0
    %v365 = vld [vmem:[%s4] sm:$0x1]
    %v367 = vlaneseq
    %v368 = vshrl.u32 %v367, 7
    %v369 = vsub.s32 0, %v368
    %v370 = vrot.slane %v365, %v369
    %v372 = vadd.f32 %v360, %v370
    %v373 = vxor.u32 %v372, 2147483648
    %v374 = vmul.f32 %v373, 1.442695
    %v375 = vpow.pop %v374
    %v376 = vadd.f32 %v375, 1.0
    %v377 = vrcp.pop %v376
    %v378 = vmul.f32 1.0, %v377
    %v379 = vmul.f32 %v378, %v155
    %v380 = vsub.f32 1.0, %v378
    %v381 = vmul.f32 %v380, %v152
    %v382 = vadd.f32 %v379, %v381
    %v383 = vpack.c.bf16 %v155, %v155
    %v384 = vpack.c.bf16 %v382, %v382
    %v385 = vld [vmem:[#allocation8] sm:$0xff]
    %v386 = vld [vmem:[#allocation8 + $0x8] sm:$0xf]
    %v387 = vld [vmem:[#allocation8 + $0xc] sm:$0xff]
    %v388 = vld [vmem:[#allocation8 + $0x14] sm:$0xf]
    %v389 = vld [vmem:[#allocation8 + $0x18] sm:$0xff]
    %v390 = vld [vmem:[#allocation8 + $0x20] sm:$0xf]
    %v391 = vld [vmem:[#allocation8 + $0x24] sm:$0xff]
    %v392 = vld [vmem:[#allocation8 + $0x2c] sm:$0xf]
    %v393 = vld [vmem:[#allocation8 + $0x30] sm:$0xff]
    %v394 = vld [vmem:[#allocation8 + $0x38] sm:$0xf]
    %v395 = vld [vmem:[#allocation8 + $0x3c] sm:$0xff]
    %v396 = vld [vmem:[#allocation8 + $0x44] sm:$0xf]
    %v397 = vld [vmem:[#allocation8 + $0x48] sm:$0xff]
    %v398 = vld [vmem:[#allocation8 + $0x50] sm:$0xf]
    %v399 = vld [vmem:[#allocation8 + $0x54] sm:$0xff]
    %v400 = vld [vmem:[#allocation8 + $0x5c] sm:$0xf]
    %v401 = vld [vmem:[#allocation8 + $0x60] sm:$0xff]
    %v402 = vld [vmem:[#allocation8 + $0x68] sm:$0xf]
    %v403 = vld [vmem:[#allocation8 + $0x6c] sm:$0xff]
    %v404 = vld [vmem:[#allocation8 + $0x74] sm:$0xf]
    %v405 = vld [vmem:[#allocation8 + $0x78] sm:$0xff]
    %v406 = vld [vmem:[#allocation8 + $0x80] sm:$0xf]
    %v407 = vld [vmem:[#allocation8 + $0x84] sm:$0xff]
    %v408 = vld [vmem:[#allocation8 + $0x8c] sm:$0xf]
    %v409 = vld [vmem:[#allocation8 + $0x90] sm:$0xff]
    %v410 = vld [vmem:[#allocation8 + $0x98] sm:$0xf]
    %v411 = vld [vmem:[#allocation8 + $0x9c] sm:$0xff]
    %v412 = vld [vmem:[#allocation8 + $0xa4] sm:$0xf]
    %v413 = vld [vmem:[#allocation8 + $0xa8] sm:$0xff]
    %v414 = vld [vmem:[#allocation8 + $0xb0] sm:$0xf]
    %v415 = vld [vmem:[#allocation8 + $0xb4] sm:$0xff]
    %v416 = vld [vmem:[#allocation8 + $0xbc] sm:$0xf]
    %v417 = vld [vmem:[#allocation8 + $0xc0] sm:$0xff]
    %v418 = vld [vmem:[#allocation8 + $0xc8] sm:$0xf]
    %v419 = vld [vmem:[#allocation8 + $0xcc] sm:$0xff]
    %v420 = vld [vmem:[#allocation8 + $0xd4] sm:$0xf]
    %v421 = vld [vmem:[#allocation8 + $0xd8] sm:$0xff]
    %v422 = vld [vmem:[#allocation8 + $0xe0] sm:$0xf]
    %v423 = vld [vmem:[#allocation8 + $0xe4] sm:$0xff]
    %v424 = vld [vmem:[#allocation8 + $0xec] sm:$0xf]
    %v425 = vld [vmem:[#allocation8 + $0xf0] sm:$0xff]
    %v426 = vld [vmem:[#allocation8 + $0xf8] sm:$0xf]
    %v427 = vld [vmem:[#allocation8 + $0xfc] sm:$0xff]
    %v428 = vld [vmem:[#allocation8 + $0x104] sm:$0xf]
    %v429 = vld [vmem:[#allocation8 + $0x108] sm:$0xff]
    %v430 = vld [vmem:[#allocation8 + $0x110] sm:$0xf]
    %v431 = vld [vmem:[#allocation8 + $0x114] sm:$0xff]
    %v432 = vld [vmem:[#allocation8 + $0x11c] sm:$0xf]
    %v433 = vld [vmem:[#allocation8 + $0x120] sm:$0xff]
    %v434 = vld [vmem:[#allocation8 + $0x128] sm:$0xf]
    %v435 = vld [vmem:[#allocation8 + $0x12c] sm:$0xff]
    %v436 = vld [vmem:[#allocation8 + $0x134] sm:$0xf]
    %v437 = vld [vmem:[#allocation8 + $0x138] sm:$0xff]
    %v438 = vld [vmem:[#allocation8 + $0x140] sm:$0xf]
    %v439 = vld [vmem:[#allocation8 + $0x144] sm:$0xff]
    %v440 = vld [vmem:[#allocation8 + $0x14c] sm:$0xf]
    %v441 = vld [vmem:[#allocation8 + $0x150] sm:$0xff]
    %v442 = vld [vmem:[#allocation8 + $0x158] sm:$0xf]
    %v443 = vld [vmem:[#allocation8 + $0x15c] sm:$0xff]
    %v444 = vld [vmem:[#allocation8 + $0x164] sm:$0xf]
    %v445 = vld [vmem:[#allocation8 + $0x168] sm:$0xff]
    %v446 = vld [vmem:[#allocation8 + $0x170] sm:$0xf]
    %v447 = vld [vmem:[#allocation8 + $0x174] sm:$0xff]
    %v448 = vld [vmem:[#allocation8 + $0x17c] sm:$0xf]
    %v449 = vld [vmem:[%s8] sm:$0x7]
    %v451 = vlaneseq
    %v452 = vshrl.u32 %v451, 7
    %v453 = vsub.s32 0, %v452
    %v454 = vrot.slane %v449, %v453
    %v455 = vlaneseq
    %v456 = vshrl.u32 %v455, 7
    %v457 = vsub.s32 1, %v456
    %v458 = vrot.slane %v449, %v457
    %v459 = vlaneseq
    %v460 = vshrl.u32 %v459, 7
    %v461 = vsub.s32 2, %v460
    %v462 = vrot.slane %v449, %v461
    %v530 = vunpack.c.l.b16 %v385
    %v531 = vunpack.c.h.b16 %v385
    %v532 = vunpack.c.l.b16 %v386
    %v533 = vunpack.c.l.b16 %v387
    %v534 = vunpack.c.h.b16 %v387
    %v535 = vunpack.c.l.b16 %v388
    %v536 = vunpack.c.l.b16 %v389
    %v537 = vunpack.c.h.b16 %v389
    %v538 = vunpack.c.l.b16 %v390
    %v539 = vunpack.c.l.b16 %v391
    %v540 = vunpack.c.h.b16 %v391
    %v541 = vunpack.c.l.b16 %v392
    %v542 = vunpack.c.l.b16 %v393
    %v543 = vunpack.c.h.b16 %v393
    %v544 = vunpack.c.l.b16 %v394
    %v545 = vunpack.c.l.b16 %v395
    %v546 = vunpack.c.h.b16 %v395
    %v547 = vunpack.c.l.b16 %v396
    %v548 = vunpack.c.l.b16 %v397
    %v549 = vunpack.c.h.b16 %v397
    %v550 = vunpack.c.l.b16 %v398
    %v551 = vunpack.c.l.b16 %v399
    %v552 = vunpack.c.h.b16 %v399
    %v553 = vunpack.c.l.b16 %v400
    %v554 = vunpack.c.l.b16 %v401
    %v555 = vunpack.c.h.b16 %v401
    %v556 = vunpack.c.l.b16 %v402
    %v557 = vunpack.c.l.b16 %v403
    %v558 = vunpack.c.h.b16 %v403
    %v559 = vunpack.c.l.b16 %v404
    %v560 = vunpack.c.l.b16 %v405
    %v561 = vunpack.c.h.b16 %v405
    %v562 = vunpack.c.l.b16 %v406
    %v563 = vunpack.c.l.b16 %v407
    %v564 = vunpack.c.h.b16 %v407
    %v565 = vunpack.c.l.b16 %v408
    %v566 = vunpack.c.l.b16 %v409
    %v567 = vunpack.c.h.b16 %v409
    %v568 = vunpack.c.l.b16 %v410
    %v569 = vunpack.c.l.b16 %v411
    %v570 = vunpack.c.h.b16 %v411
    %v571 = vunpack.c.l.b16 %v412
    %v572 = vunpack.c.l.b16 %v413
    %v573 = vunpack.c.h.b16 %v413
    %v574 = vunpack.c.l.b16 %v414
    %v575 = vunpack.c.l.b16 %v415
    %v576 = vunpack.c.h.b16 %v415
    %v577 = vunpack.c.l.b16 %v416
    %v578 = vunpack.c.l.b16 %v417
    %v579 = vunpack.c.h.b16 %v417
    %v580 = vunpack.c.l.b16 %v418
    %v581 = vunpack.c.l.b16 %v419
    %v582 = vunpack.c.h.b16 %v419
    %v583 = vunpack.c.l.b16 %v420
    %v584 = vunpack.c.l.b16 %v421
    %v585 = vunpack.c.h.b16 %v421
    %v586 = vunpack.c.l.b16 %v422
    %v587 = vunpack.c.l.b16 %v423
    %v588 = vunpack.c.h.b16 %v423
    %v589 = vunpack.c.l.b16 %v424
    %v590 = vunpack.c.l.b16 %v425
    %v591 = vunpack.c.h.b16 %v425
    %v592 = vunpack.c.l.b16 %v426
    %v593 = vunpack.c.l.b16 %v427
    %v594 = vunpack.c.h.b16 %v427
    %v595 = vunpack.c.l.b16 %v428
    %v596 = vunpack.c.l.b16 %v429
    %v597 = vunpack.c.h.b16 %v429
    %v598 = vunpack.c.l.b16 %v430
    %v599 = vunpack.c.l.b16 %v431
    %v600 = vunpack.c.h.b16 %v431
    %v601 = vunpack.c.l.b16 %v432
    %v602 = vunpack.c.l.b16 %v433
    %v603 = vunpack.c.h.b16 %v433
    %v604 = vunpack.c.l.b16 %v434
    %v605 = vunpack.c.l.b16 %v435
    %v606 = vunpack.c.h.b16 %v435
    %v607 = vunpack.c.l.b16 %v436
    %v608 = vunpack.c.l.b16 %v437
    %v609 = vunpack.c.h.b16 %v437
    %v610 = vunpack.c.l.b16 %v438
    %v611 = vunpack.c.l.b16 %v439
    %v612 = vunpack.c.h.b16 %v439
    %v613 = vunpack.c.l.b16 %v440
    %v614 = vunpack.c.l.b16 %v441
    %v615 = vunpack.c.h.b16 %v441
    %v616 = vunpack.c.l.b16 %v442
    %v617 = vunpack.c.l.b16 %v443
    %v618 = vunpack.c.h.b16 %v443
    %v619 = vunpack.c.l.b16 %v444
    %v620 = vunpack.c.l.b16 %v445
    %v621 = vunpack.c.h.b16 %v445
    %v622 = vunpack.c.l.b16 %v446
    %v623 = vunpack.c.l.b16 %v447
    %v624 = vunpack.c.h.b16 %v447
    %v625 = vunpack.c.l.b16 %v448
    %v626 = vpack.c.b16 %v533, %v530
    %v627 = vpack.c.b16 %v534, %v531
    %v628 = vpack.c.b16 %v535, %v532
    %v629 = vpack.c.b16 %v539, %v536
    %v630 = vpack.c.b16 %v540, %v537
    %v631 = vpack.c.b16 %v541, %v538
    %v632 = vpack.c.b16 %v545, %v542
    %v633 = vpack.c.b16 %v546, %v543
    %v634 = vpack.c.b16 %v547, %v544
    %v635 = vpack.c.b16 %v551, %v548
    %v636 = vpack.c.b16 %v552, %v549
    %v637 = vpack.c.b16 %v553, %v550
    %v638 = vpack.c.b16 %v557, %v554
    %v639 = vpack.c.b16 %v558, %v555
    %v640 = vpack.c.b16 %v559, %v556
    %v641 = vpack.c.b16 %v563, %v560
    %v642 = vpack.c.b16 %v564, %v561
    %v643 = vpack.c.b16 %v565, %v562
    %v644 = vpack.c.b16 %v569, %v566
    %v645 = vpack.c.b16 %v570, %v567
    %v646 = vpack.c.b16 %v571, %v568
    %v647 = vpack.c.b16 %v575, %v572
    %v648 = vpack.c.b16 %v576, %v573
    %v649 = vpack.c.b16 %v577, %v574
    %v650 = vpack.c.b16 %v581, %v578
    %v651 = vpack.c.b16 %v582, %v579
    %v652 = vpack.c.b16 %v583, %v580
    %v653 = vpack.c.b16 %v587, %v584
    %v654 = vpack.c.b16 %v588, %v585
    %v655 = vpack.c.b16 %v589, %v586
    %v656 = vpack.c.b16 %v593, %v590
    %v657 = vpack.c.b16 %v594, %v591
    %v658 = vpack.c.b16 %v595, %v592
    %v659 = vpack.c.b16 %v599, %v596
    %v660 = vpack.c.b16 %v600, %v597
    %v661 = vpack.c.b16 %v601, %v598
    %v662 = vpack.c.b16 %v605, %v602
    %v663 = vpack.c.b16 %v606, %v603
    %v664 = vpack.c.b16 %v607, %v604
    %v665 = vpack.c.b16 %v611, %v608
    %v666 = vpack.c.b16 %v612, %v609
    %v667 = vpack.c.b16 %v613, %v610
    %v668 = vpack.c.b16 %v617, %v614
    %v669 = vpack.c.b16 %v618, %v615
    %v670 = vpack.c.b16 %v619, %v616
    %v671 = vpack.c.b16 %v623, %v620
    %v672 = vpack.c.b16 %v624, %v621
    %v673 = vpack.c.b16 %v625, %v622
    %722 = vmatprep.subr.bf16.mxu0 %v648
    %723 = vmatpush1.bf16.msra.mxu0 %v647
    %724 = vmatprep.subr.bf16.mxu0 %v645
    %725 = vmatpush1.bf16.msra.mxu0 %v644
    %726 = vmatprep.subr.bf16.mxu0 %v642
    %727 = vmatpush1.bf16.msra.mxu0 %v641
    %728 = vmatprep.subr.bf16.mxu0 %v639
    %729 = vmatpush1.bf16.msra.mxu0 %v638
    %730 = vmatprep.subr.bf16.mxu0 %v636
    %731 = vmatpush1.bf16.msra.mxu0 %v635
    %732 = vmatprep.subr.bf16.mxu0 %v633
    %733 = vmatpush1.bf16.msra.mxu0 %v632
    %734 = vmatprep.subr.bf16.mxu0 %v630
    %735 = vmatpush1.bf16.msra.mxu0 %v629
    %736 = vmatprep.subr.bf16.mxu0 %v627
    %737 = vmatpush1.bf16.msra.mxu0 %v626
    %738 = vmatprep.subr.bf16.mxu0 %v672
    %739 = vmatpush2.bf16.msra.mxu0 %v671
    %740 = vmatprep.subr.bf16.mxu0 %v669
    %741 = vmatpush2.bf16.msra.mxu0 %v668
    %742 = vmatprep.subr.bf16.mxu0 %v666
    %743 = vmatpush2.bf16.msra.mxu0 %v665
    %744 = vmatprep.subr.bf16.mxu0 %v663
    %745 = vmatpush2.bf16.msra.mxu0 %v662
    %746 = vmatprep.subr.bf16.mxu0 %v660
    %747 = vmatpush2.bf16.msra.mxu0 %v659
    %748 = vmatprep.subr.bf16.mxu0 %v657
    %749 = vmatpush2.bf16.msra.mxu0 %v656
    %750 = vmatprep.subr.bf16.mxu0 %v654
    %751 = vmatpush2.bf16.msra.mxu0 %v653
    %752 = vmatprep.subr.bf16.mxu0 %v651
    %753 = vmatpush2.bf16.msra.mxu0 %v650
    %754 = vmatprep.mubr.bf16.mxu0 %v384
    %755 = vmatmul.mubr.bf16.gmra.mxu0 %v383
    %v756 = vpop.f32.mrf.mxu0
    %v757 = vadd.f32 %v454, %v756
    %v758 = vpop.f32.mrf.mxu0
    %v759 = vadd.f32 %v458, %v758
    %v760 = vpop.f32.mrf.mxu0
    %v761 = vpop.f32.mrf.mxu0
    %762 = vdwg.mxu0
    %763 = vmatprep.subr.bf16.mxu0 0
    %764 = vmatpush1.bf16.msra.mxu0 %v649
    %765 = vmatprep.subr.bf16.mxu0 0
    %766 = vmatpush1.bf16.msra.mxu0 %v646
    %767 = vmatprep.subr.bf16.mxu0 0
    %768 = vmatpush1.bf16.msra.mxu0 %v643
    %769 = vmatprep.subr.bf16.mxu0 0
    %770 = vmatpush1.bf16.msra.mxu0 %v640
    %771 = vmatprep.subr.bf16.mxu0 0
    %772 = vmatpush1.bf16.msra.mxu0 %v637
    %773 = vmatprep.subr.bf16.mxu0 0
    %774 = vmatpush1.bf16.msra.mxu0 %v634
    %775 = vmatprep.subr.bf16.mxu0 0
    %776 = vmatpush1.bf16.msra.mxu0 %v631
    %777 = vmatprep.subr.bf16.mxu0 0
    %778 = vmatpush1.bf16.msra.mxu0 %v628
    %779 = vmatprep.subr.bf16.mxu0 0
    %780 = vmatpush2.bf16.msra.mxu0 %v673
    %781 = vmatprep.subr.bf16.mxu0 0
    %782 = vmatpush2.bf16.msra.mxu0 %v670
    %783 = vmatprep.subr.bf16.mxu0 0
    %784 = vmatpush2.bf16.msra.mxu0 %v667
    %785 = vmatprep.subr.bf16.mxu0 0
    %786 = vmatpush2.bf16.msra.mxu0 %v664
    %787 = vmatprep.subr.bf16.mxu0 0
    %788 = vmatpush2.bf16.msra.mxu0 %v661
    %789 = vmatprep.subr.bf16.mxu0 0
    %790 = vmatpush2.bf16.msra.mxu0 %v658
    %791 = vmatprep.subr.bf16.mxu0 0
    %792 = vmatpush2.bf16.msra.mxu0 %v655
    %793 = vmatprep.subr.bf16.mxu0 0
    %794 = vmatpush2.bf16.msra.mxu0 %v652
    %795 = vmatprep.mubr.bf16.mxu0 %v384
    %796 = vmatmul.mubr.bf16.gmra.mxu0 %v383
    %v797 = vpop.f32.mrf.mxu0
    %v798 = vadd.f32 %v462, %v797
    %v799 = vpop.f32.mrf.mxu0
    %v800 = vpop.f32.mrf.mxu0
    %v801 = vpop.f32.mrf.mxu0
    %802 = vdwg.mxu0
    %v803 = vld [vmem:[#allocation7] sm:$0xff]
    %v804 = vpack.c.bf16 %v803, %v803
    %v805 = vld [vmem:[#allocation10] sm:$0xff]
    %v806 = vld [vmem:[#allocation10 + $0x8] sm:$0xf]
    %v807 = vld [vmem:[#allocation10 + $0xc] sm:$0xff]
    %v808 = vld [vmem:[#allocation10 + $0x14] sm:$0xf]
    %v809 = vld [vmem:[#allocation10 + $0x18] sm:$0xff]
    %v810 = vld [vmem:[#allocation10 + $0x20] sm:$0xf]
    %v811 = vld [vmem:[#allocation10 + $0x24] sm:$0xff]
    %v812 = vld [vmem:[#allocation10 + $0x2c] sm:$0xf]
    %v813 = vld [vmem:[#allocation10 + $0x30] sm:$0xff]
    %v814 = vld [vmem:[#allocation10 + $0x38] sm:$0xf]
    %v815 = vld [vmem:[#allocation10 + $0x3c] sm:$0xff]
    %v816 = vld [vmem:[#allocation10 + $0x44] sm:$0xf]
    %v817 = vld [vmem:[#allocation10 + $0x48] sm:$0xff]
    %v818 = vld [vmem:[#allocation10 + $0x50] sm:$0xf]
    %v819 = vld [vmem:[#allocation10 + $0x54] sm:$0xff]
    %v820 = vld [vmem:[#allocation10 + $0x5c] sm:$0xf]
    %v821 = vld [vmem:[#allocation10 + $0x60] sm:$0xff]
    %v822 = vld [vmem:[#allocation10 + $0x68] sm:$0xf]
    %v823 = vld [vmem:[#allocation10 + $0x6c] sm:$0xff]
    %v824 = vld [vmem:[#allocation10 + $0x74] sm:$0xf]
    %v825 = vld [vmem:[#allocation10 + $0x78] sm:$0xff]
    %v826 = vld [vmem:[#allocation10 + $0x80] sm:$0xf]
    %v827 = vld [vmem:[#allocation10 + $0x84] sm:$0xff]
    %v828 = vld [vmem:[#allocation10 + $0x8c] sm:$0xf]
    %v829 = vld [vmem:[#allocation10 + $0x90] sm:$0xff]
    %v830 = vld [vmem:[#allocation10 + $0x98] sm:$0xf]
    %v831 = vld [vmem:[#allocation10 + $0x9c] sm:$0xff]
    %v832 = vld [vmem:[#allocation10 + $0xa4] sm:$0xf]
    %v833 = vld [vmem:[#allocation10 + $0xa8] sm:$0xff]
    %v834 = vld [vmem:[#allocation10 + $0xb0] sm:$0xf]
    %v835 = vld [vmem:[#allocation10 + $0xb4] sm:$0xff]
    %v836 = vld [vmem:[#allocation10 + $0xbc] sm:$0xf]
    %v837 = vld [vmem:[%s9] sm:$0x7]
    %v839 = vlaneseq
    %v840 = vshrl.u32 %v839, 7
    %v841 = vsub.s32 0, %v840
    %v842 = vrot.slane %v837, %v841
    %v843 = vlaneseq
    %v844 = vshrl.u32 %v843, 7
    %v845 = vsub.s32 1, %v844
    %v846 = vrot.slane %v837, %v845
    %v847 = vlaneseq
    %v848 = vshrl.u32 %v847, 7
    %v849 = vsub.s32 2, %v848
    %v850 = vrot.slane %v837, %v849
    %v886 = vunpack.c.l.b16 %v805
    %v887 = vunpack.c.h.b16 %v805
    %v888 = vunpack.c.l.b16 %v806
    %v889 = vunpack.c.l.b16 %v807
    %v890 = vunpack.c.h.b16 %v807
    %v891 = vunpack.c.l.b16 %v808
    %v892 = vunpack.c.l.b16 %v809
    %v893 = vunpack.c.h.b16 %v809
    %v894 = vunpack.c.l.b16 %v810
    %v895 = vunpack.c.l.b16 %v811
    %v896 = vunpack.c.h.b16 %v811
    %v897 = vunpack.c.l.b16 %v812
    %v898 = vunpack.c.l.b16 %v813
    %v899 = vunpack.c.h.b16 %v813
    %v900 = vunpack.c.l.b16 %v814
    %v901 = vunpack.c.l.b16 %v815
    %v902 = vunpack.c.h.b16 %v815
    %v903 = vunpack.c.l.b16 %v816
    %v904 = vunpack.c.l.b16 %v817
    %v905 = vunpack.c.h.b16 %v817
    %v906 = vunpack.c.l.b16 %v818
    %v907 = vunpack.c.l.b16 %v819
    %v908 = vunpack.c.h.b16 %v819
    %v909 = vunpack.c.l.b16 %v820
    %v910 = vunpack.c.l.b16 %v821
    %v911 = vunpack.c.h.b16 %v821
    %v912 = vunpack.c.l.b16 %v822
    %v913 = vunpack.c.l.b16 %v823
    %v914 = vunpack.c.h.b16 %v823
    %v915 = vunpack.c.l.b16 %v824
    %v916 = vunpack.c.l.b16 %v825
    %v917 = vunpack.c.h.b16 %v825
    %v918 = vunpack.c.l.b16 %v826
    %v919 = vunpack.c.l.b16 %v827
    %v920 = vunpack.c.h.b16 %v827
    %v921 = vunpack.c.l.b16 %v828
    %v922 = vunpack.c.l.b16 %v829
    %v923 = vunpack.c.h.b16 %v829
    %v924 = vunpack.c.l.b16 %v830
    %v925 = vunpack.c.l.b16 %v831
    %v926 = vunpack.c.h.b16 %v831
    %v927 = vunpack.c.l.b16 %v832
    %v928 = vunpack.c.l.b16 %v833
    %v929 = vunpack.c.h.b16 %v833
    %v930 = vunpack.c.l.b16 %v834
    %v931 = vunpack.c.l.b16 %v835
    %v932 = vunpack.c.h.b16 %v835
    %v933 = vunpack.c.l.b16 %v836
    %v934 = vpack.c.b16 %v889, %v886
    %v935 = vpack.c.b16 %v890, %v887
    %v936 = vpack.c.b16 %v891, %v888
    %v937 = vpack.c.b16 %v895, %v892
    %v938 = vpack.c.b16 %v896, %v893
    %v939 = vpack.c.b16 %v897, %v894
    %v940 = vpack.c.b16 %v901, %v898
    %v941 = vpack.c.b16 %v902, %v899
    %v942 = vpack.c.b16 %v903, %v900
    %v943 = vpack.c.b16 %v907, %v904
    %v944 = vpack.c.b16 %v908, %v905
    %v945 = vpack.c.b16 %v909, %v906
    %v946 = vpack.c.b16 %v913, %v910
    %v947 = vpack.c.b16 %v914, %v911
    %v948 = vpack.c.b16 %v915, %v912
    %v949 = vpack.c.b16 %v919, %v916
    %v950 = vpack.c.b16 %v920, %v917
    %v951 = vpack.c.b16 %v921, %v918
    %v952 = vpack.c.b16 %v925, %v922
    %v953 = vpack.c.b16 %v926, %v923
    %v954 = vpack.c.b16 %v927, %v924
    %v955 = vpack.c.b16 %v931, %v928
    %v956 = vpack.c.b16 %v932, %v929
    %v957 = vpack.c.b16 %v933, %v930
    %982 = vmatprep.subr.bf16.mxu0 %v956
    %983 = vmatpush1.bf16.msra.mxu0 %v955
    %984 = vmatprep.subr.bf16.mxu0 %v953
    %985 = vmatpush1.bf16.msra.mxu0 %v952
    %986 = vmatprep.subr.bf16.mxu0 %v950
    %987 = vmatpush1.bf16.msra.mxu0 %v949
    %988 = vmatprep.subr.bf16.mxu0 %v947
    %989 = vmatpush1.bf16.msra.mxu0 %v946
    %990 = vmatprep.subr.bf16.mxu0 %v944
    %991 = vmatpush1.bf16.msra.mxu0 %v943
    %992 = vmatprep.subr.bf16.mxu0 %v941
    %993 = vmatpush1.bf16.msra.mxu0 %v940
    %994 = vmatprep.subr.bf16.mxu0 %v938
    %995 = vmatpush1.bf16.msra.mxu0 %v937
    %996 = vmatprep.subr.bf16.mxu0 %v935
    %997 = vmatpush1.bf16.msra.mxu0 %v934
    %998 = vmatprep.subr.bf16.mxu0 0
    %999 = vmatpush2.bf16.msra.mxu0 0
    %1000 = vmatprep.subr.bf16.mxu0 0
    %1001 = vmatpush2.bf16.msra.mxu0 0
    %1002 = vmatprep.subr.bf16.mxu0 0
    %1003 = vmatpush2.bf16.msra.mxu0 0
    %1004 = vmatprep.subr.bf16.mxu0 0
    %1005 = vmatpush2.bf16.msra.mxu0 0
    %1006 = vmatprep.subr.bf16.mxu0 0
    %1007 = vmatpush2.bf16.msra.mxu0 0
    %1008 = vmatprep.subr.bf16.mxu0 0
    %1009 = vmatpush2.bf16.msra.mxu0 0
    %1010 = vmatprep.subr.bf16.mxu0 0
    %1011 = vmatpush2.bf16.msra.mxu0 0
    %1012 = vmatprep.subr.bf16.mxu0 0
    %1013 = vmatpush2.bf16.msra.mxu0 0
    %1014 = vmatprep.mubr.bf16.mxu0 0
    %1015 = vmatmul.mubr.bf16.gmra.mxu0 %v804
    %v1016 = vpop.f32.mrf.mxu0
    %v1017 = vadd.f32 %v842, %v1016
    %v1018 = vpop.f32.mrf.mxu0
    %v1019 = vadd.f32 %v846, %v1018
    %v1020 = vpop.f32.mrf.mxu0
    %v1021 = vpop.f32.mrf.mxu0
    %1022 = vdwg.mxu0
    %1023 = vmatprep.subr.bf16.mxu0 0
    %1024 = vmatpush1.bf16.msra.mxu0 %v957
    %1025 = vmatprep.subr.bf16.mxu0 0
    %1026 = vmatpush1.bf16.msra.mxu0 %v954
    %1027 = vmatprep.subr.bf16.mxu0 0
    %1028 = vmatpush1.bf16.msra.mxu0 %v951
    %1029 = vmatprep.subr.bf16.mxu0 0
    %1030 = vmatpush1.bf16.msra.mxu0 %v948
    %1031 = vmatprep.subr.bf16.mxu0 0
    %1032 = vmatpush1.bf16.msra.mxu0 %v945
    %1033 = vmatprep.subr.bf16.mxu0 0
    %1034 = vmatpush1.bf16.msra.mxu0 %v942
    %1035 = vmatprep.subr.bf16.mxu0 0
    %1036 = vmatpush1.bf16.msra.mxu0 %v939
    %1037 = vmatprep.subr.bf16.mxu0 0
    %1038 = vmatpush1.bf16.msra.mxu0 %v936
    %1039 = vmatprep.subr.bf16.mxu0 0
    %1040 = vmatpush2.bf16.msra.mxu0 0
    %1041 = vmatprep.subr.bf16.mxu0 0
    %1042 = vmatpush2.bf16.msra.mxu0 0
    %1043 = vmatprep.subr.bf16.mxu0 0
    %1044 = vmatpush2.bf16.msra.mxu0 0
    %1045 = vmatprep.subr.bf16.mxu0 0
    %1046 = vmatpush2.bf16.msra.mxu0 0
    %1047 = vmatprep.subr.bf16.mxu0 0
    %1048 = vmatpush2.bf16.msra.mxu0 0
    %1049 = vmatprep.subr.bf16.mxu0 0
    %1050 = vmatpush2.bf16.msra.mxu0 0
    %1051 = vmatprep.subr.bf16.mxu0 0
    %1052 = vmatpush2.bf16.msra.mxu0 0
    %1053 = vmatprep.subr.bf16.mxu0 0
    %1054 = vmatpush2.bf16.msra.mxu0 0
    %1055 = vmatprep.mubr.bf16.mxu0 0
    %1056 = vmatmul.mubr.bf16.gmra.mxu0 %v804
    %v1057 = vpop.f32.mrf.mxu0
    %v1058 = vadd.f32 %v850, %v1057
    %v1059 = vpop.f32.mrf.mxu0
    %v1060 = vpop.f32.mrf.mxu0
    %v1061 = vpop.f32.mrf.mxu0
    %1062 = vdwg.mxu0
    %v1063 = vadd.f32 %v757, %v1017
    %v1064 = vxor.u32 %v1063, 2147483648
    %v1065 = vmul.f32 %v1064, 1.442695
    %v1066 = vpow.pop %v1065
    %v1067 = vadd.f32 %v1066, 1.0
    %v1068 = vrcp.pop %v1067
    %v1069 = vmul.f32 1.0, %v1068
    %v1070 = vadd.f32 %v759, %v1019
    %v1071 = vxor.u32 %v1070, 2147483648
    %v1072 = vmul.f32 %v1071, 1.442695
    %v1073 = vpow.pop %v1072
    %v1074 = vadd.f32 %v1073, 1.0
    %v1075 = vrcp.pop %v1074
    %v1076 = vmul.f32 1.0, %v1075
    %v1077 = vmul.f32 %v1069, %v1058
    %v1078 = vadd.f32 %v798, %v1077
    %v1079 = vtanh.pop %v1078
    %v1080 = vsub.f32 1.0, %v1076
    %v1081 = vmul.f32 %v1080, %v1079
    %v1082 = vmul.f32 %v1076, %v803
    %v1083 = vadd.f32 %v1081, %v1082
    %1084 = vst [vmem:[#allocation14] sm:$0xff] %v1083
    %v1085 = vpack.c.bf16 %v1083, %v1083
    %v1086 = vld [vmem:[#allocation11] sm:$0xff]
    %v1087 = vld [vmem:[#allocation11 + $0x8] sm:$0xf]
    %v1088 = vld [vmem:[#allocation11 + $0xc] sm:$0xff]
    %v1089 = vld [vmem:[#allocation11 + $0x14] sm:$0xf]
    %v1090 = vld [vmem:[#allocation11 + $0x18] sm:$0xff]
    %v1091 = vld [vmem:[#allocation11 + $0x20] sm:$0xf]
    %v1092 = vld [vmem:[#allocation11 + $0x24] sm:$0xff]
    %v1093 = vld [vmem:[#allocation11 + $0x2c] sm:$0xf]
    %v1094 = vld [vmem:[#allocation11 + $0x30] sm:$0xff]
    %v1095 = vld [vmem:[#allocation11 + $0x38] sm:$0xf]
    %v1096 = vld [vmem:[#allocation11 + $0x3c] sm:$0xff]
    %v1097 = vld [vmem:[#allocation11 + $0x44] sm:$0xf]
    %v1098 = vld [vmem:[#allocation11 + $0x48] sm:$0xff]
    %v1099 = vld [vmem:[#allocation11 + $0x50] sm:$0xf]
    %v1100 = vld [vmem:[#allocation11 + $0x54] sm:$0xff]
    %v1101 = vld [vmem:[#allocation11 + $0x5c] sm:$0xf]
    %v1102 = vld [vmem:[#allocation11 + $0x60] sm:$0xff]
    %v1103 = vld [vmem:[#allocation11 + $0x68] sm:$0xf]
    %v1104 = vld [vmem:[#allocation11 + $0x6c] sm:$0xff]
    %v1105 = vld [vmem:[#allocation11 + $0x74] sm:$0xf]
    %v1106 = vld [vmem:[#allocation11 + $0x78] sm:$0xff]
    %v1107 = vld [vmem:[#allocation11 + $0x80] sm:$0xf]
    %v1108 = vld [vmem:[#allocation11 + $0x84] sm:$0xff]
    %v1109 = vld [vmem:[#allocation11 + $0x8c] sm:$0xf]
    %v1110 = vld [vmem:[#allocation11 + $0x90] sm:$0xff]
    %v1111 = vld [vmem:[#allocation11 + $0x98] sm:$0xf]
    %v1112 = vld [vmem:[#allocation11 + $0x9c] sm:$0xff]
    %v1113 = vld [vmem:[#allocation11 + $0xa4] sm:$0xf]
    %v1114 = vld [vmem:[#allocation11 + $0xa8] sm:$0xff]
    %v1115 = vld [vmem:[#allocation11 + $0xb0] sm:$0xf]
    %v1116 = vld [vmem:[#allocation11 + $0xb4] sm:$0xff]
    %v1117 = vld [vmem:[#allocation11 + $0xbc] sm:$0xf]
    %v1118 = vld [vmem:[%s12] sm:$0x7]
    %v1120 = vlaneseq
    %v1121 = vshrl.u32 %v1120, 7
    %v1122 = vsub.s32 0, %v1121
    %v1123 = vrot.slane %v1118, %v1122
    %v1124 = vlaneseq
    %v1125 = vshrl.u32 %v1124, 7
    %v1126 = vsub.s32 1, %v1125
    %v1127 = vrot.slane %v1118, %v1126
    %v1128 = vlaneseq
    %v1129 = vshrl.u32 %v1128, 7
    %v1130 = vsub.s32 2, %v1129
    %v1131 = vrot.slane %v1118, %v1130
    %v1167 = vunpack.c.l.b16 %v1086
    %v1168 = vunpack.c.h.b16 %v1086
    %v1169 = vunpack.c.l.b16 %v1087
    %v1170 = vunpack.c.l.b16 %v1088
    %v1171 = vunpack.c.h.b16 %v1088
    %v1172 = vunpack.c.l.b16 %v1089
    %v1173 = vunpack.c.l.b16 %v1090
    %v1174 = vunpack.c.h.b16 %v1090
    %v1175 = vunpack.c.l.b16 %v1091
    %v1176 = vunpack.c.l.b16 %v1092
    %v1177 = vunpack.c.h.b16 %v1092
    %v1178 = vunpack.c.l.b16 %v1093
    %v1179 = vunpack.c.l.b16 %v1094
    %v1180 = vunpack.c.h.b16 %v1094
    %v1181 = vunpack.c.l.b16 %v1095
    %v1182 = vunpack.c.l.b16 %v1096
    %v1183 = vunpack.c.h.b16 %v1096
    %v1184 = vunpack.c.l.b16 %v1097
    %v1185 = vunpack.c.l.b16 %v1098
    %v1186 = vunpack.c.h.b16 %v1098
    %v1187 = vunpack.c.l.b16 %v1099
    %v1188 = vunpack.c.l.b16 %v1100
    %v1189 = vunpack.c.h.b16 %v1100
    %v1190 = vunpack.c.l.b16 %v1101
    %v1191 = vunpack.c.l.b16 %v1102
    %v1192 = vunpack.c.h.b16 %v1102
    %v1193 = vunpack.c.l.b16 %v1103
    %v1194 = vunpack.c.l.b16 %v1104
    %v1195 = vunpack.c.h.b16 %v1104
    %v1196 = vunpack.c.l.b16 %v1105
    %v1197 = vunpack.c.l.b16 %v1106
    %v1198 = vunpack.c.h.b16 %v1106
    %v1199 = vunpack.c.l.b16 %v1107
    %v1200 = vunpack.c.l.b16 %v1108
    %v1201 = vunpack.c.h.b16 %v1108
    %v1202 = vunpack.c.l.b16 %v1109
    %v1203 = vunpack.c.l.b16 %v1110
    %v1204 = vunpack.c.h.b16 %v1110
    %v1205 = vunpack.c.l.b16 %v1111
    %v1206 = vunpack.c.l.b16 %v1112
    %v1207 = vunpack.c.h.b16 %v1112
    %v1208 = vunpack.c.l.b16 %v1113
    %v1209 = vunpack.c.l.b16 %v1114
    %v1210 = vunpack.c.h.b16 %v1114
    %v1211 = vunpack.c.l.b16 %v1115
    %v1212 = vunpack.c.l.b16 %v1116
    %v1213 = vunpack.c.h.b16 %v1116
    %v1214 = vunpack.c.l.b16 %v1117
    %v1215 = vpack.c.b16 %v1170, %v1167
    %v1216 = vpack.c.b16 %v1171, %v1168
    %v1217 = vpack.c.b16 %v1172, %v1169
    %v1218 = vpack.c.b16 %v1176, %v1173
    %v1219 = vpack.c.b16 %v1177, %v1174
    %v1220 = vpack.c.b16 %v1178, %v1175
    %v1221 = vpack.c.b16 %v1182, %v1179
    %v1222 = vpack.c.b16 %v1183, %v1180
    %v1223 = vpack.c.b16 %v1184, %v1181
    %v1224 = vpack.c.b16 %v1188, %v1185
    %v1225 = vpack.c.b16 %v1189, %v1186
    %v1226 = vpack.c.b16 %v1190, %v1187
    %v1227 = vpack.c.b16 %v1194, %v1191
    %v1228 = vpack.c.b16 %v1195, %v1192
    %v1229 = vpack.c.b16 %v1196, %v1193
    %v1230 = vpack.c.b16 %v1200, %v1197
    %v1231 = vpack.c.b16 %v1201, %v1198
    %v1232 = vpack.c.b16 %v1202, %v1199
    %v1233 = vpack.c.b16 %v1206, %v1203
    %v1234 = vpack.c.b16 %v1207, %v1204
    %v1235 = vpack.c.b16 %v1208, %v1205
    %v1236 = vpack.c.b16 %v1212, %v1209
    %v1237 = vpack.c.b16 %v1213, %v1210
    %v1238 = vpack.c.b16 %v1214, %v1211
    %1263 = vmatprep.subr.bf16.mxu0 %v1237
    %1264 = vmatpush1.bf16.msra.mxu0 %v1236
    %1265 = vmatprep.subr.bf16.mxu0 %v1234
    %1266 = vmatpush1.bf16.msra.mxu0 %v1233
    %1267 = vmatprep.subr.bf16.mxu0 %v1231
    %1268 = vmatpush1.bf16.msra.mxu0 %v1230
    %1269 = vmatprep.subr.bf16.mxu0 %v1228
    %1270 = vmatpush1.bf16.msra.mxu0 %v1227
    %1271 = vmatprep.subr.bf16.mxu0 %v1225
    %1272 = vmatpush1.bf16.msra.mxu0 %v1224
    %1273 = vmatprep.subr.bf16.mxu0 %v1222
    %1274 = vmatpush1.bf16.msra.mxu0 %v1221
    %1275 = vmatprep.subr.bf16.mxu0 %v1219
    %1276 = vmatpush1.bf16.msra.mxu0 %v1218
    %1277 = vmatprep.subr.bf16.mxu0 %v1216
    %1278 = vmatpush1.bf16.msra.mxu0 %v1215
    %1279 = vmatprep.subr.bf16.mxu0 0
    %1280 = vmatpush2.bf16.msra.mxu0 0
    %1281 = vmatprep.subr.bf16.mxu0 0
    %1282 = vmatpush2.bf16.msra.mxu0 0
    %1283 = vmatprep.subr.bf16.mxu0 0
    %1284 = vmatpush2.bf16.msra.mxu0 0
    %1285 = vmatprep.subr.bf16.mxu0 0
    %1286 = vmatpush2.bf16.msra.mxu0 0
    %1287 = vmatprep.subr.bf16.mxu0 0
    %1288 = vmatpush2.bf16.msra.mxu0 0
    %1289 = vmatprep.subr.bf16.mxu0 0
    %1290 = vmatpush2.bf16.msra.mxu0 0
    %1291 = vmatprep.subr.bf16.mxu0 0
    %1292 = vmatpush2.bf16.msra.mxu0 0
    %1293 = vmatprep.subr.bf16.mxu0 0
    %1294 = vmatpush2.bf16.msra.mxu0 0
    %1295 = vmatprep.mubr.bf16.mxu0 0
    %1296 = vmatmul.mubr.bf16.gmra.mxu0 %v1085
    %v1297 = vpop.f32.mrf.mxu0
    %v1298 = vadd.f32 %v1123, %v1297
    %v1299 = vpop.f32.mrf.mxu0
    %v1300 = vadd.f32 %v1127, %v1299
    %v1301 = vpop.f32.mrf.mxu0
    %v1302 = vpop.f32.mrf.mxu0
    %1303 = vdwg.mxu0
    %1304 = vmatprep.subr.bf16.mxu0 0
    %1305 = vmatpush1.bf16.msra.mxu0 %v1238
    %1306 = vmatprep.subr.bf16.mxu0 0
    %1307 = vmatpush1.bf16.msra.mxu0 %v1235
    %1308 = vmatprep.subr.bf16.mxu0 0
    %1309 = vmatpush1.bf16.msra.mxu0 %v1232
    %1310 = vmatprep.subr.bf16.mxu0 0
    %1311 = vmatpush1.bf16.msra.mxu0 %v1229
    %1312 = vmatprep.subr.bf16.mxu0 0
    %1313 = vmatpush1.bf16.msra.mxu0 %v1226
    %1314 = vmatprep.subr.bf16.mxu0 0
    %1315 = vmatpush1.bf16.msra.mxu0 %v1223
    %1316 = vmatprep.subr.bf16.mxu0 0
    %1317 = vmatpush1.bf16.msra.mxu0 %v1220
    %1318 = vmatprep.subr.bf16.mxu0 0
    %1319 = vmatpush1.bf16.msra.mxu0 %v1217
    %1320 = vmatprep.subr.bf16.mxu0 0
    %1321 = vmatpush2.bf16.msra.mxu0 0
    %1322 = vmatprep.subr.bf16.mxu0 0
    %1323 = vmatpush2.bf16.msra.mxu0 0
    %1324 = vmatprep.subr.bf16.mxu0 0
    %1325 = vmatpush2.bf16.msra.mxu0 0
    %1326 = vmatprep.subr.bf16.mxu0 0
    %1327 = vmatpush2.bf16.msra.mxu0 0
    %1328 = vmatprep.subr.bf16.mxu0 0
    %1329 = vmatpush2.bf16.msra.mxu0 0
    %1330 = vmatprep.subr.bf16.mxu0 0
    %1331 = vmatpush2.bf16.msra.mxu0 0
    %1332 = vmatprep.subr.bf16.mxu0 0
    %1333 = vmatpush2.bf16.msra.mxu0 0
    %1334 = vmatprep.subr.bf16.mxu0 0
    %1335 = vmatpush2.bf16.msra.mxu0 0
    %1336 = vmatprep.mubr.bf16.mxu0 0
    %1337 = vmatmul.mubr.bf16.gmra.mxu0 %v1085
    %v1338 = vpop.f32.mrf.mxu0
    %v1339 = vadd.f32 %v1131, %v1338
    %v1340 = vpop.f32.mrf.mxu0
    %v1341 = vpop.f32.mrf.mxu0
    %v1342 = vpop.f32.mrf.mxu0
    %1343 = vdwg.mxu0
    %s1344 = scalar_lea.vmem [#allocation7], 8
    %v1345 = vld [vmem:[%s1344] sm:$0xff]
    %v1346 = vpack.c.bf16 %v1345, %v1345
    %v1347 = vld [vmem:[#allocation13] sm:$0xff]
    %v1348 = vld [vmem:[#allocation13 + $0x8] sm:$0xf]
    %v1349 = vld [vmem:[#allocation13 + $0xc] sm:$0xff]
    %v1350 = vld [vmem:[#allocation13 + $0x14] sm:$0xf]
    %v1351 = vld [vmem:[#allocation13 + $0x18] sm:$0xff]
    %v1352 = vld [vmem:[#allocation13 + $0x20] sm:$0xf]
    %v1353 = vld [vmem:[#allocation13 + $0x24] sm:$0xff]
    %v1354 = vld [vmem:[#allocation13 + $0x2c] sm:$0xf]
    %v1355 = vld [vmem:[#allocation13 + $0x30] sm:$0xff]
    %v1356 = vld [vmem:[#allocation13 + $0x38] sm:$0xf]
    %v1357 = vld [vmem:[#allocation13 + $0x3c] sm:$0xff]
    %v1358 = vld [vmem:[#allocation13 + $0x44] sm:$0xf]
    %v1359 = vld [vmem:[#allocation13 + $0x48] sm:$0xff]
    %v1360 = vld [vmem:[#allocation13 + $0x50] sm:$0xf]
    %v1361 = vld [vmem:[#allocation13 + $0x54] sm:$0xff]
    %v1362 = vld [vmem:[#allocation13 + $0x5c] sm:$0xf]
    %v1363 = vld [vmem:[#allocation13 + $0x60] sm:$0xff]
    %v1364 = vld [vmem:[#allocation13 + $0x68] sm:$0xf]
    %v1365 = vld [vmem:[#allocation13 + $0x6c] sm:$0xff]
    %v1366 = vld [vmem:[#allocation13 + $0x74] sm:$0xf]
    %v1367 = vld [vmem:[#allocation13 + $0x78] sm:$0xff]
    %v1368 = vld [vmem:[#allocation13 + $0x80] sm:$0xf]
    %v1369 = vld [vmem:[#allocation13 + $0x84] sm:$0xff]
    %v1370 = vld [vmem:[#allocation13 + $0x8c] sm:$0xf]
    %v1371 = vld [vmem:[#allocation13 + $0x90] sm:$0xff]
    %v1372 = vld [vmem:[#allocation13 + $0x98] sm:$0xf]
    %v1373 = vld [vmem:[#allocation13 + $0x9c] sm:$0xff]
    %v1374 = vld [vmem:[#allocation13 + $0xa4] sm:$0xf]
    %v1375 = vld [vmem:[#allocation13 + $0xa8] sm:$0xff]
    %v1376 = vld [vmem:[#allocation13 + $0xb0] sm:$0xf]
    %v1377 = vld [vmem:[#allocation13 + $0xb4] sm:$0xff]
    %v1378 = vld [vmem:[#allocation13 + $0xbc] sm:$0xf]
    %v1379 = vld [vmem:[%s13] sm:$0x7]
    %v1381 = vlaneseq
    %v1382 = vshrl.u32 %v1381, 7
    %v1383 = vsub.s32 0, %v1382
    %v1384 = vrot.slane %v1379, %v1383
    %v1385 = vlaneseq
    %v1386 = vshrl.u32 %v1385, 7
    %v1387 = vsub.s32 1, %v1386
    %v1388 = vrot.slane %v1379, %v1387
    %v1389 = vlaneseq
    %v1390 = vshrl.u32 %v1389, 7
    %v1391 = vsub.s32 2, %v1390
    %v1392 = vrot.slane %v1379, %v1391
    %v1428 = vunpack.c.l.b16 %v1347
    %v1429 = vunpack.c.h.b16 %v1347
    %v1430 = vunpack.c.l.b16 %v1348
    %v1431 = vunpack.c.l.b16 %v1349
    %v1432 = vunpack.c.h.b16 %v1349
    %v1433 = vunpack.c.l.b16 %v1350
    %v1434 = vunpack.c.l.b16 %v1351
    %v1435 = vunpack.c.h.b16 %v1351
    %v1436 = vunpack.c.l.b16 %v1352
    %v1437 = vunpack.c.l.b16 %v1353
    %v1438 = vunpack.c.h.b16 %v1353
    %v1439 = vunpack.c.l.b16 %v1354
    %v1440 = vunpack.c.l.b16 %v1355
    %v1441 = vunpack.c.h.b16 %v1355
    %v1442 = vunpack.c.l.b16 %v1356
    %v1443 = vunpack.c.l.b16 %v1357
    %v1444 = vunpack.c.h.b16 %v1357
    %v1445 = vunpack.c.l.b16 %v1358
    %v1446 = vunpack.c.l.b16 %v1359
    %v1447 = vunpack.c.h.b16 %v1359
    %v1448 = vunpack.c.l.b16 %v1360
    %v1449 = vunpack.c.l.b16 %v1361
    %v1450 = vunpack.c.h.b16 %v1361
    %v1451 = vunpack.c.l.b16 %v1362
    %v1452 = vunpack.c.l.b16 %v1363
    %v1453 = vunpack.c.h.b16 %v1363
    %v1454 = vunpack.c.l.b16 %v1364
    %v1455 = vunpack.c.l.b16 %v1365
    %v1456 = vunpack.c.h.b16 %v1365
    %v1457 = vunpack.c.l.b16 %v1366
    %v1458 = vunpack.c.l.b16 %v1367
    %v1459 = vunpack.c.h.b16 %v1367
    %v1460 = vunpack.c.l.b16 %v1368
    %v1461 = vunpack.c.l.b16 %v1369
    %v1462 = vunpack.c.h.b16 %v1369
    %v1463 = vunpack.c.l.b16 %v1370
    %v1464 = vunpack.c.l.b16 %v1371
    %v1465 = vunpack.c.h.b16 %v1371
    %v1466 = vunpack.c.l.b16 %v1372
    %v1467 = vunpack.c.l.b16 %v1373
    %v1468 = vunpack.c.h.b16 %v1373
    %v1469 = vunpack.c.l.b16 %v1374
    %v1470 = vunpack.c.l.b16 %v1375
    %v1471 = vunpack.c.h.b16 %v1375
    %v1472 = vunpack.c.l.b16 %v1376
    %v1473 = vunpack.c.l.b16 %v1377
    %v1474 = vunpack.c.h.b16 %v1377
    %v1475 = vunpack.c.l.b16 %v1378
    %v1476 = vpack.c.b16 %v1431, %v1428
    %v1477 = vpack.c.b16 %v1432, %v1429
    %v1478 = vpack.c.b16 %v1433, %v1430
    %v1479 = vpack.c.b16 %v1437, %v1434
    %v1480 = vpack.c.b16 %v1438, %v1435
    %v1481 = vpack.c.b16 %v1439, %v1436
    %v1482 = vpack.c.b16 %v1443, %v1440
    %v1483 = vpack.c.b16 %v1444, %v1441
    %v1484 = vpack.c.b16 %v1445, %v1442
    %v1485 = vpack.c.b16 %v1449, %v1446
    %v1486 = vpack.c.b16 %v1450, %v1447
    %v1487 = vpack.c.b16 %v1451, %v1448
    %v1488 = vpack.c.b16 %v1455, %v1452
    %v1489 = vpack.c.b16 %v1456, %v1453
    %v1490 = vpack.c.b16 %v1457, %v1454
    %v1491 = vpack.c.b16 %v1461, %v1458
    %v1492 = vpack.c.b16 %v1462, %v1459
    %v1493 = vpack.c.b16 %v1463, %v1460
    %v1494 = vpack.c.b16 %v1467, %v1464
    %v1495 = vpack.c.b16 %v1468, %v1465
    %v1496 = vpack.c.b16 %v1469, %v1466
    %v1497 = vpack.c.b16 %v1473, %v1470
    %v1498 = vpack.c.b16 %v1474, %v1471
    %v1499 = vpack.c.b16 %v1475, %v1472
    %1524 = vmatprep.subr.bf16.mxu0 %v1498
    %1525 = vmatpush1.bf16.msra.mxu0 %v1497
    %1526 = vmatprep.subr.bf16.mxu0 %v1495
    %1527 = vmatpush1.bf16.msra.mxu0 %v1494
    %1528 = vmatprep.subr.bf16.mxu0 %v1492
    %1529 = vmatpush1.bf16.msra.mxu0 %v1491
    %1530 = vmatprep.subr.bf16.mxu0 %v1489
    %1531 = vmatpush1.bf16.msra.mxu0 %v1488
    %1532 = vmatprep.subr.bf16.mxu0 %v1486
    %1533 = vmatpush1.bf16.msra.mxu0 %v1485
    %1534 = vmatprep.subr.bf16.mxu0 %v1483
    %1535 = vmatpush1.bf16.msra.mxu0 %v1482
    %1536 = vmatprep.subr.bf16.mxu0 %v1480
    %1537 = vmatpush1.bf16.msra.mxu0 %v1479
    %1538 = vmatprep.subr.bf16.mxu0 %v1477
    %1539 = vmatpush1.bf16.msra.mxu0 %v1476
    %1540 = vmatprep.subr.bf16.mxu0 0
    %1541 = vmatpush2.bf16.msra.mxu0 0
    %1542 = vmatprep.subr.bf16.mxu0 0
    %1543 = vmatpush2.bf16.msra.mxu0 0
    %1544 = vmatprep.subr.bf16.mxu0 0
    %1545 = vmatpush2.bf16.msra.mxu0 0
    %1546 = vmatprep.subr.bf16.mxu0 0
    %1547 = vmatpush2.bf16.msra.mxu0 0
    %1548 = vmatprep.subr.bf16.mxu0 0
    %1549 = vmatpush2.bf16.msra.mxu0 0
    %1550 = vmatprep.subr.bf16.mxu0 0
    %1551 = vmatpush2.bf16.msra.mxu0 0
    %1552 = vmatprep.subr.bf16.mxu0 0
    %1553 = vmatpush2.bf16.msra.mxu0 0
    %1554 = vmatprep.subr.bf16.mxu0 0
    %1555 = vmatpush2.bf16.msra.mxu0 0
    %1556 = vmatprep.mubr.bf16.mxu0 0
    %1557 = vmatmul.mubr.bf16.gmra.mxu0 %v1346
    %v1558 = vpop.f32.mrf.mxu0
    %v1559 = vadd.f32 %v1384, %v1558
    %v1560 = vpop.f32.mrf.mxu0
    %v1561 = vadd.f32 %v1388, %v1560
    %v1562 = vpop.f32.mrf.mxu0
    %v1563 = vpop.f32.mrf.mxu0
    %1564 = vdwg.mxu0
    %1565 = vmatprep.subr.bf16.mxu0 0
    %1566 = vmatpush1.bf16.msra.mxu0 %v1499
    %1567 = vmatprep.subr.bf16.mxu0 0
    %1568 = vmatpush1.bf16.msra.mxu0 %v1496
    %1569 = vmatprep.subr.bf16.mxu0 0
    %1570 = vmatpush1.bf16.msra.mxu0 %v1493
    %1571 = vmatprep.subr.bf16.mxu0 0
    %1572 = vmatpush1.bf16.msra.mxu0 %v1490
    %1573 = vmatprep.subr.bf16.mxu0 0
    %1574 = vmatpush1.bf16.msra.mxu0 %v1487
    %1575 = vmatprep.subr.bf16.mxu0 0
    %1576 = vmatpush1.bf16.msra.mxu0 %v1484
    %1577 = vmatprep.subr.bf16.mxu0 0
    %1578 = vmatpush1.bf16.msra.mxu0 %v1481
    %1579 = vmatprep.subr.bf16.mxu0 0
    %1580 = vmatpush1.bf16.msra.mxu0 %v1478
    %1581 = vmatprep.subr.bf16.mxu0 0
    %1582 = vmatpush2.bf16.msra.mxu0 0
    %1583 = vmatprep.subr.bf16.mxu0 0
    %1584 = vmatpush2.bf16.msra.mxu0 0
    %1585 = vmatprep.subr.bf16.mxu0 0
    %1586 = vmatpush2.bf16.msra.mxu0 0
    %1587 = vmatprep.subr.bf16.mxu0 0
    %1588 = vmatpush2.bf16.msra.mxu0 0
    %1589 = vmatprep.subr.bf16.mxu0 0
    %1590 = vmatpush2.bf16.msra.mxu0 0
    %1591 = vmatprep.subr.bf16.mxu0 0
    %1592 = vmatpush2.bf16.msra.mxu0 0
    %1593 = vmatprep.subr.bf16.mxu0 0
    %1594 = vmatpush2.bf16.msra.mxu0 0
    %1595 = vmatprep.subr.bf16.mxu0 0
    %1596 = vmatpush2.bf16.msra.mxu0 0
    %1597 = vmatprep.mubr.bf16.mxu0 0
    %1598 = vmatmul.mubr.bf16.gmra.mxu0 %v1346
    %v1599 = vpop.f32.mrf.mxu0
    %v1600 = vadd.f32 %v1392, %v1599
    %v1601 = vpop.f32.mrf.mxu0
    %v1602 = vpop.f32.mrf.mxu0
    %v1603 = vpop.f32.mrf.mxu0
    %1604 = vdwg.mxu0
    %v1605 = vadd.f32 %v1298, %v1559
    %v1606 = vxor.u32 %v1605, 2147483648
    %v1607 = vmul.f32 %v1606, 1.442695
    %v1608 = vpow.pop %v1607
    %v1609 = vadd.f32 %v1608, 1.0
    %v1610 = vrcp.pop %v1609
    %v1611 = vmul.f32 1.0, %v1610
    %v1612 = vadd.f32 %v1300, %v1561
    %v1613 = vxor.u32 %v1612, 2147483648
    %v1614 = vmul.f32 %v1613, 1.442695
    %v1615 = vpow.pop %v1614
    %v1616 = vadd.f32 %v1615, 1.0
    %v1617 = vrcp.pop %v1616
    %v1618 = vmul.f32 1.0, %v1617
    %v1619 = vmul.f32 %v1611, %v1600
    %v1620 = vadd.f32 %v1339, %v1619
    %v1621 = vtanh.pop %v1620
    %v1622 = vsub.f32 1.0, %v1618
    %v1623 = vmul.f32 %v1622, %v1621
    %v1624 = vmul.f32 %v1618, %v1345
    %v1625 = vadd.f32 %v1623, %v1624
    %s1626 = scalar_lea.vmem [#allocation14], 8
    %1627 = vst [vmem:[%s1626] sm:$0xff] %v1625
    %v1628 = vpack.c.bf16 %v1625, %v1625
    %1629 = vst [vmem:[#allocation15] sm:$0xf] %v1628
    // Predicated region
    $region86: #{tpu_custom_call.1} parent=1 // pred_check
      _
    $region87: #{tpu_custom_call.1} parent=1 // pred_check_branch
      %1631 = sbr.rel (0) target = $region89
    $region88: #{tpu_custom_call.1} parent=1 // pred_region
      %s1633 = ssub.s32 256, 256
      %1634 = vsyncadd [#allocation4], %s1633
      %s1635 = sshll.u32 [#allocation14], 4
      %s1636 = int_to_ptr.vmem [resolvable:$true] %s1635
      %1641 = dma.vmem_to_hbm [thread:$0]  %s1636, 256, %s14, [#allocation4], 128, 128, 8
    $region89: #{tpu_custom_call.1} parent=1 // pred_fallthru
      _
    // Predicated region
    $region90: #{tpu_custom_call.1} parent=1 // pred_check
      _
    $region91: #{tpu_custom_call.1} parent=1 // pred_check_branch
      %1643 = sbr.rel (0) target = $region93
    $region92: #{tpu_custom_call.1} parent=1 // pred_region
      %s1645 = ssub.s32 64, 64
      %1646 = vsyncadd [#allocation16], %s1645
      %s1648 = sshll.u32 [#allocation15], 4
      %s1649 = int_to_ptr.vmem [resolvable:$true] %s1648
      %1651 = dma.vmem_to_hbm [thread:$0]  %s1649, 64, %s15, [#allocation16]
    $region93: #{tpu_custom_call.1} parent=1 // pred_fallthru
      _
    // Predicated region
    $region94: #{tpu_custom_call.1} parent=1 // pred_check
      _
    $region95: #{tpu_custom_call.1} parent=1 // pred_check_branch
      %1653 = sbr.rel (0) target = $region97
    $region96: #{tpu_custom_call.1} parent=1 // pred_region
      %1654 = dma.done [#allocation4], 256
    $region97: #{tpu_custom_call.1} parent=1 // pred_fallthru
      _
    // Predicated region
    $region98: #{tpu_custom_call.1} parent=1 // pred_check
      _
    $region99: #{tpu_custom_call.1} parent=1 // pred_check_branch
      %1656 = sbr.rel (0) target = $region101
    $region100: #{tpu_custom_call.1} parent=1 // pred_region
      %1657 = dma.done [#allocation16], 64
    $region101: #{tpu_custom_call.1} parent=1 // pred_fallthru
      _
    %1658 = vsyncpa [#allocation3], 1
    %1659 = vsyncpa [#allocation6], 1
    %1660 = vsyncpa [#allocation9], 1
    %1661 = vsyncpa [#allocation12], 1
    %1662 = vsyncpa [#allocation4], 1
    %1663 = vsyncpa [#allocation16], 1

</llo_original>
